<compile_context>
chip_gen: v7x
topology: tpu7x:2x2x1
jax: 0.10.0
libtpu: 0.0.40
codegen_flags: <defaults>
</compile_context>

<pallas_src>
import functools

import jax
import jax.numpy as jnp
from jax import lax
from jax.experimental import pallas as pl
from jax.experimental.pallas import tpu as pltpu


def lstm_tagger_kernel(T, B, H, V,
                       ids_ref, len_ref, mask_ref, emb_ref,
                       wih_ref, whh_ref, b_ref, wd_ref, bd_ref,
                       out_ref, hseq_ref):
    """Fused embedding + single-layer LSTM recurrence + dense projection.

    ids_ref  : (T*B, 1)   int32    time-major token ids (row r = t*B + b)
    len_ref  : (B, 1)     int32    per-sequence valid lengths (0 for pad rows)
    mask_ref : (T*B, 1)   float32  1.0 where t < length[b], else 0.0
    emb_ref  : (V, E)     float32  embedding table
    wih_ref  : (E, 4H)    float32  gate order [i, f, o, g]
    whh_ref  : (H, 4H)    float32  gate order [i, f, o, g]
    b_ref    : (1, 4H)    float32  b_ih + b_hh, gate order [i, f, o, g]
    wd_ref   : (H, O_pad) float32  dense weight transposed, lane-padded
    bd_ref   : (1, O_pad) float32
    out_ref  : (T*B, O_pad) float32
    hseq_ref : (T*B, H)   float32  VMEM scratch holding the per-step hidden states
    """
    H3 = 3 * H

    # ---- fused embedding gather (one-hot matmul) + hoisted input projection.
    # gates_x = one_hot(ids) @ (emb_table @ W_ih) + b  — two small lane-dense matmuls.
    one_hot = (lax.broadcasted_iota(jnp.int32, (T * B, V), 1)
               == ids_ref[...]).astype(jnp.float32)                     # (T*B, V)
    embproj = jnp.dot(emb_ref[...], wih_ref[...],
                      preferred_element_type=jnp.float32)               # (V, 4H)
    gates_x = (jnp.dot(one_hot, embproj,
                       preferred_element_type=jnp.float32)
               + b_ref[...])                                            # (T*B, 4H)

    whh = whh_ref[...]                                                  # (H, 4H)
    lengths = len_ref[...]                                              # (B, 1) int32

    h = jnp.zeros((B, H), jnp.float32)
    c = jnp.zeros((B, H), jnp.float32)

    # T is small & static -> fully unrolled; only h@W_hh + gate math stays on the
    # serial critical path.  Each gates_x slice is exactly one sublane-aligned vreg row-block.
    for t in range(T):
        gates = gates_x[t * B:(t + 1) * B, :] + jnp.dot(
            h, whh, preferred_element_type=jnp.float32)                 # (B, 4H)

        # gate order [i, f, o | g]: one sigmoid over 3H lanes, one tanh over H lanes
        sig = jax.nn.sigmoid(gates[:, :H3])                             # (B, 3H)
        g = jnp.tanh(gates[:, H3:])                                     # (B, H)
        i_g = sig[:, 0 * H:1 * H]
        f_g = sig[:, 1 * H:2 * H]
        o_g = sig[:, 2 * H:3 * H]

        c_new = f_g * c + i_g * g
        h_new = o_g * jnp.tanh(c_new)

        # store raw h_new; pad_packed_sequence zeroing is applied once after the loop
        hseq_ref[t * B:(t + 1) * B, :] = h_new

        # packed-sequence semantics: freeze state once t >= length (off the h-chain)
        valid = t < lengths                                             # (B, 1) bool
        h = jnp.where(valid, h_new, h)
        c = jnp.where(valid, c_new, c)

    # ---- one full-width pad-zeroing multiply + hoisted dense head,
    #      single lane-dense unmasked store.
    hseq = hseq_ref[...] * mask_ref[...]                                # (T*B, H)
    out_ref[...] = (jnp.dot(hseq, wd_ref[...],
                            preferred_element_type=jnp.float32)
                    + bd_ref[...])                                      # (T*B, O_pad)


def bilstm_tagger_forward(input_ids, params):
    """input_ids: (B, T) int32.  Returns logits (B, T, O) float32."""
    emb_table, w_ih_t, w_hh_t, b, w_dense_t, b_dense = params

    B, T = input_ids.shape
    V, E = emb_table.shape
    H = w_hh_t.shape[0]
    O = w_dense_t.shape[1]

    SUB, LANE = 8, 128
    B_pad = max(SUB, ((B + SUB - 1) // SUB) * SUB)      # 8-sublane aligned batch
    O_pad = max(LANE, ((O + LANE - 1) // LANE) * LANE)  # lane-dense output width

    # pack_padded_sequence lengths (Dropout is identity in eval mode)
    # TODO(synk): assumes padding is strictly trailing, like pack_padded_sequence.
    lengths = (input_ids != 0).sum(axis=1).astype(jnp.int32)            # (B,)

    # pad batch to 8 sublanes; time-major ids column (row r = t*B_pad + b)
    ids_p = jnp.zeros((B_pad, T), jnp.int32).at[:B].set(input_ids.astype(jnp.int32))
    ids_tm = jnp.transpose(ids_p, (1, 0)).reshape(T * B_pad, 1)
    len_p = jnp.zeros((B_pad, 1), jnp.int32).at[:B, 0].set(lengths)

    # precomputed pad_packed_sequence zero mask, time-major (T*B_pad, 1)
    mask_tm = (jnp.arange(T, dtype=jnp.int32)[:, None]
               < len_p[:, 0][None, :]).astype(jnp.float32).reshape(T * B_pad, 1)

    # gate reorder [i, f, g, o] (PyTorch) -> [i, f, o, g] so one sigmoid covers 3H lanes
    def reorder_gates(w):
        return jnp.concatenate(
            [w[..., 0 * H:2 * H], w[..., 3 * H:4 * H], w[..., 2 * H:3 * H]], axis=-1)

    w_ih_r = reorder_gates(w_ih_t)
    w_hh_r = reorder_gates(w_hh_t)
    b_r = reorder_gates(b)

    # lane-pad the dense head so the single output store is unmasked
    wd_p = jnp.zeros((H, O_pad), jnp.float32).at[:, :O].set(w_dense_t)
    bd_p = jnp.zeros((1, O_pad), jnp.float32).at[:, :O].set(b_dense)

    kernel = functools.partial(lstm_tagger_kernel, T, B_pad, H, V)
    out_flat = pl.pallas_call(
        kernel,
        out_shape=jax.ShapeDtypeStruct((T * B_pad, O_pad), jnp.float32),
        in_specs=[pl.BlockSpec(memory_space=pltpu.MemorySpace.VMEM)] * 9,
        out_specs=pl.BlockSpec(memory_space=pltpu.MemorySpace.VMEM),
        scratch_shapes=[pltpu.VMEM((T * B_pad, H), jnp.float32)],
    )(ids_tm, len_p, mask_tm, emb_table.astype(jnp.float32),
      w_ih_r, w_hh_r, b_r, wd_p, bd_p)

    out = out_flat.reshape(T, B_pad, O_pad)[:, :B, :O]                  # (T, B, O)
    return jnp.transpose(out, (1, 0, 2))                                # (B, T, O)


def make_params(key, vocab_size, embed_dim, hidden_dim, output_dim):
    """Deterministic parameter init matching the PyTorch module's shapes.

    Weights are kept in PyTorch gate order [i, f, g, o]; the wrapper reorders
    them for the kernel.
    """
    ks = jax.random.split(key, 7)
    k_lstm = 1.0 / jnp.sqrt(hidden_dim)
    k_dense = 1.0 / jnp.sqrt(hidden_dim)

    emb_table = jax.random.normal(ks[0], (vocab_size, embed_dim), jnp.float32)
    # PyTorch weight_ih_l0: (4H, E); stored transposed (E, 4H). Gate order i,f,g,o.
    w_ih_t = jax.random.uniform(ks[1], (embed_dim, 4 * hidden_dim), jnp.float32,
                                -k_lstm, k_lstm)
    w_hh_t = jax.random.uniform(ks[2], (hidden_dim, 4 * hidden_dim), jnp.float32,
                                -k_lstm, k_lstm)
    b_ih = jax.random.uniform(ks[3], (4 * hidden_dim,), jnp.float32, -k_lstm, k_lstm)
    b_hh = jax.random.uniform(ks[4], (4 * hidden_dim,), jnp.float32, -k_lstm, k_lstm)
    b = (b_ih + b_hh)[None, :]                                          # (1, 4H)
    # dense weight (O, H) stored transposed (H, O)
    w_dense_t = jax.random.uniform(ks[5], (hidden_dim, output_dim), jnp.float32,
                                   -k_dense, k_dense)
    b_dense = jax.random.uniform(ks[6], (output_dim,), jnp.float32,
                                 -k_dense, k_dense)[None, :]            # (1, O)
    return (emb_table, w_ih_t, w_hh_t, b, w_dense_t, b_dense)


def reference_forward(input_ids, params):
    """Pure-JAX reference (same math, PyTorch gate order) for a correctness check."""
    emb_table, w_ih_t, w_hh_t, b, w_dense_t, b_dense = params
    lengths = (input_ids != 0).sum(axis=1).astype(jnp.int32)            # (B,)
    x = jnp.take(emb_table, input_ids, axis=0).astype(jnp.float32)      # (B, T, E)
    B, T, E = x.shape
    H = w_hh_t.shape[0]

    def step(carry, inp):
        h, c = carry
        x_t, t = inp                                                    # (B,E), ()
        gates = x_t @ w_ih_t + h @ w_hh_t + b
        i = jax.nn.sigmoid(gates[:, 0 * H:1 * H])
        f = jax.nn.sigmoid(gates[:, 1 * H:2 * H])
        g = jnp.tanh(gates[:, 2 * H:3 * H])
        o = jax.nn.sigmoid(gates[:, 3 * H:4 * H])
        c_new = f * c + i * g
        h_new = o * jnp.tanh(c_new)
        valid = (t < lengths)[:, None]                                  # (B, 1)
        h2 = jnp.where(valid, h_new, h)
        c2 = jnp.where(valid, c_new, c)
        return (h2, c2), jnp.where(valid, h_new, 0.0)

    h0 = jnp.zeros((B, H), jnp.float32)
    c0 = jnp.zeros((B, H), jnp.float32)
    _, outs = lax.scan(step, (h0, c0),
                       (jnp.transpose(x, (1, 0, 2)), jnp.arange(T)))
    lstm_out = jnp.transpose(outs, (1, 0, 2))                           # (B, T, H)
    return lstm_out @ w_dense_t + b_dense


if __name__ == "__main__":
    vocab_size, embed_dim, hidden_dim, output_dim = 50, 16, 32, 8
    B, T = 2, 8

    key = jax.random.PRNGKey(0)
    k_ids, k_params = jax.random.split(key)

    # deterministic input ids; first sequence full-length, second padded with 0s
    ids = jax.random.randint(k_ids, (B, T), 1, vocab_size, dtype=jnp.int32)
    ids = ids.at[1, 5:].set(0)   # sequence 1 has length 5 (trailing pad)

    params = make_params(k_params, vocab_size, embed_dim, hidden_dim, output_dim)

    logits = jax.block_until_ready(bilstm_tagger_forward(ids, params))
    ref = jax.block_until_ready(reference_forward(ids, params))

    assert logits.shape == (B, T, output_dim)
    assert jnp.allclose(logits, ref, rtol=1e-4, atol=1e-4), "mismatch vs reference"

    print("KERNEL_OK")
</pallas_src>

<mosaic_0001>
module attributes {stable_mosaic.version = 11 : i64} {
  func.func @lstm_tagger_kernel(%arg0: memref<64x1xi32, #tpu.memory_space<vmem>>, %arg1: memref<8x1xi32, #tpu.memory_space<vmem>>, %arg2: memref<64x1xf32, #tpu.memory_space<vmem>>, %arg3: memref<50x16xf32, #tpu.memory_space<vmem>>, %arg4: memref<16x128xf32, #tpu.memory_space<vmem>>, %arg5: memref<32x128xf32, #tpu.memory_space<vmem>>, %arg6: memref<1x128xf32, #tpu.memory_space<vmem>>, %arg7: memref<32x128xf32, #tpu.memory_space<vmem>>, %arg8: memref<1x128xf32, #tpu.memory_space<vmem>>, %arg9: memref<64x128xf32, #tpu.memory_space<vmem>>, %arg10: memref<64x32xf32, #tpu.memory_space<vmem>>) attributes {dimension_semantics = [], scalar_prefetch = 0 : i64, scratch_operands = 1 : i64, tpu.core_type = #tpu.core_type<tc>} {
    %0 = tpu.iota {dimensions = array<i32: 1>} : vector<64x50xi32>
    %c0 = arith.constant 0 : index
    %c0_0 = arith.constant 0 : index
    %1 = vector.load %arg0[%c0, %c0_0] : memref<64x1xi32, #tpu.memory_space<vmem>>, vector<64x1xi32>
    %2 = vector.broadcast %1 : vector<64x1xi32> to vector<64x50xi32>
    %3 = arith.cmpi eq, %0, %2 : vector<64x50xi32>
    %4 = arith.extui %3 : vector<64x50xi1> to vector<64x50xi32>
    %5 = arith.sitofp %4 : vector<64x50xi32> to vector<64x50xf32>
    %c0_1 = arith.constant 0 : index
    %c0_2 = arith.constant 0 : index
    %6 = vector.load %arg3[%c0_1, %c0_2] : memref<50x16xf32, #tpu.memory_space<vmem>>, vector<50x16xf32>
    %c0_3 = arith.constant 0 : index
    %c0_4 = arith.constant 0 : index
    %7 = vector.load %arg4[%c0_3, %c0_4] : memref<16x128xf32, #tpu.memory_space<vmem>>, vector<16x128xf32>
    %cst = arith.constant dense<0.000000e+00> : vector<50x128xf32>
    %8 = tpu.matmul %6, %7, %cst {dimension_numbers = #tpu.dot_dimension_numbers<[1], [0], [0], [1], [0, 0, 1, 1], [], []>} : vector<50x16xf32>, vector<16x128xf32>, vector<50x128xf32> -> vector<50x128xf32>
    %cst_5 = arith.constant dense<0.000000e+00> : vector<64x128xf32>
    %9 = tpu.matmul %5, %8, %cst_5 {dimension_numbers = #tpu.dot_dimension_numbers<[1], [0], [0], [1], [0, 0, 1, 1], [], []>} : vector<64x50xf32>, vector<50x128xf32>, vector<64x128xf32> -> vector<64x128xf32>
    %c0_6 = arith.constant 0 : index
    %c0_7 = arith.constant 0 : index
    %10 = vector.load %arg6[%c0_6, %c0_7] : memref<1x128xf32, #tpu.memory_space<vmem>>, vector<1x128xf32>
    %11 = vector.broadcast %10 : vector<1x128xf32> to vector<64x128xf32>
    %12 = arith.addf %9, %11 : vector<64x128xf32>
    %c0_8 = arith.constant 0 : index
    %c0_9 = arith.constant 0 : index
    %13 = vector.load %arg5[%c0_8, %c0_9] : memref<32x128xf32, #tpu.memory_space<vmem>>, vector<32x128xf32>
    %c0_10 = arith.constant 0 : index
    %c0_11 = arith.constant 0 : index
    %14 = vector.load %arg1[%c0_10, %c0_11] : memref<8x1xi32, #tpu.memory_space<vmem>>, vector<8x1xi32>
    %cst_12 = arith.constant 0.000000e+00 : f32
    %15 = vector.broadcast %cst_12 : f32 to vector<8x32xf32>
    %cst_13 = arith.constant 0.000000e+00 : f32
    %16 = vector.broadcast %cst_13 : f32 to vector<8x32xf32>
    %17 = vector.extract_strided_slice %12 {offsets = [0, 0], sizes = [8, 128], strides = [1, 1]} : vector<64x128xf32> to vector<8x128xf32>
    %cst_14 = arith.constant dense<0.000000e+00> : vector<8x128xf32>
    %18 = tpu.matmul %15, %13, %cst_14 {dimension_numbers = #tpu.dot_dimension_numbers<[1], [0], [0], [1], [0, 0, 1, 1], [], []>} : vector<8x32xf32>, vector<32x128xf32>, vector<8x128xf32> -> vector<8x128xf32>
    %19 = arith.addf %17, %18 : vector<8x128xf32>
    %20 = vector.extract_strided_slice %19 {offsets = [0, 0], sizes = [8, 96], strides = [1, 1]} : vector<8x128xf32> to vector<8x96xf32>
    %21 = arith.negf %20 : vector<8x96xf32>
    %22 = math.exp %21 : vector<8x96xf32>
    %cst_15 = arith.constant 1.000000e+00 : f32
    %23 = vector.broadcast %cst_15 : f32 to vector<8x96xf32>
    %24 = arith.addf %23, %22 : vector<8x96xf32>
    %25 = arith.divf %23, %24 : vector<8x96xf32>
    %26 = vector.extract_strided_slice %19 {offsets = [0, 96], sizes = [8, 32], strides = [1, 1]} : vector<8x128xf32> to vector<8x32xf32>
    %27 = math.tanh %26 : vector<8x32xf32>
    %28 = vector.extract_strided_slice %25 {offsets = [0, 0], sizes = [8, 32], strides = [1, 1]} : vector<8x96xf32> to vector<8x32xf32>
    %29 = vector.extract_strided_slice %25 {offsets = [0, 32], sizes = [8, 32], strides = [1, 1]} : vector<8x96xf32> to vector<8x32xf32>
    %30 = vector.extract_strided_slice %25 {offsets = [0, 64], sizes = [8, 32], strides = [1, 1]} : vector<8x96xf32> to vector<8x32xf32>
    %31 = arith.mulf %29, %16 : vector<8x32xf32>
    %32 = arith.mulf %28, %27 : vector<8x32xf32>
    %33 = arith.addf %31, %32 : vector<8x32xf32>
    %34 = math.tanh %33 : vector<8x32xf32>
    %35 = arith.mulf %30, %34 : vector<8x32xf32>
    %c0_16 = arith.constant 0 : index
    %c0_17 = arith.constant 0 : index
    %36 = vector.load %arg10[%c0_16, %c0_17] : memref<64x32xf32, #tpu.memory_space<vmem>>, vector<8x32xf32>
    tpu.vector_store %arg10[%c0_16, %c0_17], %35 {strides = array<i32>} : memref<64x32xf32, #tpu.memory_space<vmem>>, vector<8x32xf32>,
    %c0_i32 = arith.constant 0 : i32
    %37 = vector.broadcast %c0_i32 : i32 to vector<8x1xi32>
    %38 = arith.cmpi sgt, %14, %37 : vector<8x1xi32>
    %39 = vector.shape_cast %38 : vector<8x1xi1> to vector<8x1xi1>
    %40 = vector.broadcast %39 : vector<8x1xi1> to vector<8x32xi1>
    %41 = arith.select %40, %35, %15 : vector<8x32xi1>, vector<8x32xf32>
    %42 = vector.shape_cast %38 : vector<8x1xi1> to vector<8x1xi1>
    %43 = vector.broadcast %42 : vector<8x1xi1> to vector<8x32xi1>
    %44 = arith.select %43, %33, %16 : vector<8x32xi1>, vector<8x32xf32>
    %45 = vector.extract_strided_slice %12 {offsets = [8, 0], sizes = [8, 128], strides = [1, 1]} : vector<64x128xf32> to vector<8x128xf32>
    %cst_18 = arith.constant dense<0.000000e+00> : vector<8x128xf32>
    %46 = tpu.matmul %41, %13, %cst_18 {dimension_numbers = #tpu.dot_dimension_numbers<[1], [0], [0], [1], [0, 0, 1, 1], [], []>} : vector<8x32xf32>, vector<32x128xf32>, vector<8x128xf32> -> vector<8x128xf32>
    %47 = arith.addf %45, %46 : vector<8x128xf32>
    %48 = vector.extract_strided_slice %47 {offsets = [0, 0], sizes = [8, 96], strides = [1, 1]} : vector<8x128xf32> to vector<8x96xf32>
    %49 = arith.negf %48 : vector<8x96xf32>
    %50 = math.exp %49 : vector<8x96xf32>
    %cst_19 = arith.constant 1.000000e+00 : f32
    %51 = vector.broadcast %cst_19 : f32 to vector<8x96xf32>
    %52 = arith.addf %51, %50 : vector<8x96xf32>
    %53 = arith.divf %51, %52 : vector<8x96xf32>
    %54 = vector.extract_strided_slice %47 {offsets = [0, 96], sizes = [8, 32], strides = [1, 1]} : vector<8x128xf32> to vector<8x32xf32>
    %55 = math.tanh %54 : vector<8x32xf32>
    %56 = vector.extract_strided_slice %53 {offsets = [0, 0], sizes = [8, 32], strides = [1, 1]} : vector<8x96xf32> to vector<8x32xf32>
    %57 = vector.extract_strided_slice %53 {offsets = [0, 32], sizes = [8, 32], strides = [1, 1]} : vector<8x96xf32> to vector<8x32xf32>
    %58 = vector.extract_strided_slice %53 {offsets = [0, 64], sizes = [8, 32], strides = [1, 1]} : vector<8x96xf32> to vector<8x32xf32>
    %59 = arith.mulf %57, %44 : vector<8x32xf32>
    %60 = arith.mulf %56, %55 : vector<8x32xf32>
    %61 = arith.addf %59, %60 : vector<8x32xf32>
    %62 = math.tanh %61 : vector<8x32xf32>
    %63 = arith.mulf %58, %62 : vector<8x32xf32>
    %c8 = arith.constant 8 : index
    %c0_20 = arith.constant 0 : index
    %64 = vector.load %arg10[%c8, %c0_20] : memref<64x32xf32, #tpu.memory_space<vmem>>, vector<8x32xf32>
    tpu.vector_store %arg10[%c8, %c0_20], %63 {strides = array<i32>} : memref<64x32xf32, #tpu.memory_space<vmem>>, vector<8x32xf32>,
    %c1_i32 = arith.constant 1 : i32
    %65 = vector.broadcast %c1_i32 : i32 to vector<8x1xi32>
    %66 = arith.cmpi sgt, %14, %65 : vector<8x1xi32>
    %67 = vector.shape_cast %66 : vector<8x1xi1> to vector<8x1xi1>
    %68 = vector.broadcast %67 : vector<8x1xi1> to vector<8x32xi1>
    %69 = arith.select %68, %63, %41 : vector<8x32xi1>, vector<8x32xf32>
    %70 = vector.shape_cast %66 : vector<8x1xi1> to vector<8x1xi1>
    %71 = vector.broadcast %70 : vector<8x1xi1> to vector<8x32xi1>
    %72 = arith.select %71, %61, %44 : vector<8x32xi1>, vector<8x32xf32>
    %73 = vector.extract_strided_slice %12 {offsets = [16, 0], sizes = [8, 128], strides = [1, 1]} : vector<64x128xf32> to vector<8x128xf32>
    %cst_21 = arith.constant dense<0.000000e+00> : vector<8x128xf32>
    %74 = tpu.matmul %69, %13, %cst_21 {dimension_numbers = #tpu.dot_dimension_numbers<[1], [0], [0], [1], [0, 0, 1, 1], [], []>} : vector<8x32xf32>, vector<32x128xf32>, vector<8x128xf32> -> vector<8x128xf32>
    %75 = arith.addf %73, %74 : vector<8x128xf32>
    %76 = vector.extract_strided_slice %75 {offsets = [0, 0], sizes = [8, 96], strides = [1, 1]} : vector<8x128xf32> to vector<8x96xf32>
    %77 = arith.negf %76 : vector<8x96xf32>
    %78 = math.exp %77 : vector<8x96xf32>
    %cst_22 = arith.constant 1.000000e+00 : f32
    %79 = vector.broadcast %cst_22 : f32 to vector<8x96xf32>
    %80 = arith.addf %79, %78 : vector<8x96xf32>
    %81 = arith.divf %79, %80 : vector<8x96xf32>
    %82 = vector.extract_strided_slice %75 {offsets = [0, 96], sizes = [8, 32], strides = [1, 1]} : vector<8x128xf32> to vector<8x32xf32>
    %83 = math.tanh %82 : vector<8x32xf32>
    %84 = vector.extract_strided_slice %81 {offsets = [0, 0], sizes = [8, 32], strides = [1, 1]} : vector<8x96xf32> to vector<8x32xf32>
    %85 = vector.extract_strided_slice %81 {offsets = [0, 32], sizes = [8, 32], strides = [1, 1]} : vector<8x96xf32> to vector<8x32xf32>
    %86 = vector.extract_strided_slice %81 {offsets = [0, 64], sizes = [8, 32], strides = [1, 1]} : vector<8x96xf32> to vector<8x32xf32>
    %87 = arith.mulf %85, %72 : vector<8x32xf32>
    %88 = arith.mulf %84, %83 : vector<8x32xf32>
    %89 = arith.addf %87, %88 : vector<8x32xf32>
    %90 = math.tanh %89 : vector<8x32xf32>
    %91 = arith.mulf %86, %90 : vector<8x32xf32>
    %c16 = arith.constant 16 : index
    %c0_23 = arith.constant 0 : index
    %92 = vector.load %arg10[%c16, %c0_23] : memref<64x32xf32, #tpu.memory_space<vmem>>, vector<8x32xf32>
    tpu.vector_store %arg10[%c16, %c0_23], %91 {strides = array<i32>} : memref<64x32xf32, #tpu.memory_space<vmem>>, vector<8x32xf32>,
    %c2_i32 = arith.constant 2 : i32
    %93 = vector.broadcast %c2_i32 : i32 to vector<8x1xi32>
    %94 = arith.cmpi sgt, %14, %93 : vector<8x1xi32>
    %95 = vector.shape_cast %94 : vector<8x1xi1> to vector<8x1xi1>
    %96 = vector.broadcast %95 : vector<8x1xi1> to vector<8x32xi1>
    %97 = arith.select %96, %91, %69 : vector<8x32xi1>, vector<8x32xf32>
    %98 = vector.shape_cast %94 : vector<8x1xi1> to vector<8x1xi1>
    %99 = vector.broadcast %98 : vector<8x1xi1> to vector<8x32xi1>
    %100 = arith.select %99, %89, %72 : vector<8x32xi1>, vector<8x32xf32>
    %101 = vector.extract_strided_slice %12 {offsets = [24, 0], sizes = [8, 128], strides = [1, 1]} : vector<64x128xf32> to vector<8x128xf32>
    %cst_24 = arith.constant dense<0.000000e+00> : vector<8x128xf32>
    %102 = tpu.matmul %97, %13, %cst_24 {dimension_numbers = #tpu.dot_dimension_numbers<[1], [0], [0], [1], [0, 0, 1, 1], [], []>} : vector<8x32xf32>, vector<32x128xf32>, vector<8x128xf32> -> vector<8x128xf32>
    %103 = arith.addf %101, %102 : vector<8x128xf32>
    %104 = vector.extract_strided_slice %103 {offsets = [0, 0], sizes = [8, 96], strides = [1, 1]} : vector<8x128xf32> to vector<8x96xf32>
    %105 = arith.negf %104 : vector<8x96xf32>
    %106 = math.exp %105 : vector<8x96xf32>
    %cst_25 = arith.constant 1.000000e+00 : f32
    %107 = vector.broadcast %cst_25 : f32 to vector<8x96xf32>
    %108 = arith.addf %107, %106 : vector<8x96xf32>
    %109 = arith.divf %107, %108 : vector<8x96xf32>
    %110 = vector.extract_strided_slice %103 {offsets = [0, 96], sizes = [8, 32], strides = [1, 1]} : vector<8x128xf32> to vector<8x32xf32>
    %111 = math.tanh %110 : vector<8x32xf32>
    %112 = vector.extract_strided_slice %109 {offsets = [0, 0], sizes = [8, 32], strides = [1, 1]} : vector<8x96xf32> to vector<8x32xf32>
    %113 = vector.extract_strided_slice %109 {offsets = [0, 32], sizes = [8, 32], strides = [1, 1]} : vector<8x96xf32> to vector<8x32xf32>
    %114 = vector.extract_strided_slice %109 {offsets = [0, 64], sizes = [8, 32], strides = [1, 1]} : vector<8x96xf32> to vector<8x32xf32>
    %115 = arith.mulf %113, %100 : vector<8x32xf32>
    %116 = arith.mulf %112, %111 : vector<8x32xf32>
    %117 = arith.addf %115, %116 : vector<8x32xf32>
    %118 = math.tanh %117 : vector<8x32xf32>
    %119 = arith.mulf %114, %118 : vector<8x32xf32>
    %c24 = arith.constant 24 : index
    %c0_26 = arith.constant 0 : index
    %120 = vector.load %arg10[%c24, %c0_26] : memref<64x32xf32, #tpu.memory_space<vmem>>, vector<8x32xf32>
    tpu.vector_store %arg10[%c24, %c0_26], %119 {strides = array<i32>} : memref<64x32xf32, #tpu.memory_space<vmem>>, vector<8x32xf32>,
    %c3_i32 = arith.constant 3 : i32
    %121 = vector.broadcast %c3_i32 : i32 to vector<8x1xi32>
    %122 = arith.cmpi sgt, %14, %121 : vector<8x1xi32>
    %123 = vector.shape_cast %122 : vector<8x1xi1> to vector<8x1xi1>
    %124 = vector.broadcast %123 : vector<8x1xi1> to vector<8x32xi1>
    %125 = arith.select %124, %119, %97 : vector<8x32xi1>, vector<8x32xf32>
    %126 = vector.shape_cast %122 : vector<8x1xi1> to vector<8x1xi1>
    %127 = vector.broadcast %126 : vector<8x1xi1> to vector<8x32xi1>
    %128 = arith.select %127, %117, %100 : vector<8x32xi1>, vector<8x32xf32>
    %129 = vector.extract_strided_slice %12 {offsets = [32, 0], sizes = [8, 128], strides = [1, 1]} : vector<64x128xf32> to vector<8x128xf32>
    %cst_27 = arith.constant dense<0.000000e+00> : vector<8x128xf32>
    %130 = tpu.matmul %125, %13, %cst_27 {dimension_numbers = #tpu.dot_dimension_numbers<[1], [0], [0], [1], [0, 0, 1, 1], [], []>} : vector<8x32xf32>, vector<32x128xf32>, vector<8x128xf32> -> vector<8x128xf32>
    %131 = arith.addf %129, %130 : vector<8x128xf32>
    %132 = vector.extract_strided_slice %131 {offsets = [0, 0], sizes = [8, 96], strides = [1, 1]} : vector<8x128xf32> to vector<8x96xf32>
    %133 = arith.negf %132 : vector<8x96xf32>
    %134 = math.exp %133 : vector<8x96xf32>
    %cst_28 = arith.constant 1.000000e+00 : f32
    %135 = vector.broadcast %cst_28 : f32 to vector<8x96xf32>
    %136 = arith.addf %135, %134 : vector<8x96xf32>
    %137 = arith.divf %135, %136 : vector<8x96xf32>
    %138 = vector.extract_strided_slice %131 {offsets = [0, 96], sizes = [8, 32], strides = [1, 1]} : vector<8x128xf32> to vector<8x32xf32>
    %139 = math.tanh %138 : vector<8x32xf32>
    %140 = vector.extract_strided_slice %137 {offsets = [0, 0], sizes = [8, 32], strides = [1, 1]} : vector<8x96xf32> to vector<8x32xf32>
    %141 = vector.extract_strided_slice %137 {offsets = [0, 32], sizes = [8, 32], strides = [1, 1]} : vector<8x96xf32> to vector<8x32xf32>
    %142 = vector.extract_strided_slice %137 {offsets = [0, 64], sizes = [8, 32], strides = [1, 1]} : vector<8x96xf32> to vector<8x32xf32>
    %143 = arith.mulf %141, %128 : vector<8x32xf32>
    %144 = arith.mulf %140, %139 : vector<8x32xf32>
    %145 = arith.addf %143, %144 : vector<8x32xf32>
    %146 = math.tanh %145 : vector<8x32xf32>
    %147 = arith.mulf %142, %146 : vector<8x32xf32>
    %c32 = arith.constant 32 : index
    %c0_29 = arith.constant 0 : index
    %148 = vector.load %arg10[%c32, %c0_29] : memref<64x32xf32, #tpu.memory_space<vmem>>, vector<8x32xf32>
    tpu.vector_store %arg10[%c32, %c0_29], %147 {strides = array<i32>} : memref<64x32xf32, #tpu.memory_space<vmem>>, vector<8x32xf32>,
    %c4_i32 = arith.constant 4 : i32
    %149 = vector.broadcast %c4_i32 : i32 to vector<8x1xi32>
    %150 = arith.cmpi sgt, %14, %149 : vector<8x1xi32>
    %151 = vector.shape_cast %150 : vector<8x1xi1> to vector<8x1xi1>
    %152 = vector.broadcast %151 : vector<8x1xi1> to vector<8x32xi1>
    %153 = arith.select %152, %147, %125 : vector<8x32xi1>, vector<8x32xf32>
    %154 = vector.shape_cast %150 : vector<8x1xi1> to vector<8x1xi1>
    %155 = vector.broadcast %154 : vector<8x1xi1> to vector<8x32xi1>
    %156 = arith.select %155, %145, %128 : vector<8x32xi1>, vector<8x32xf32>
    %157 = vector.extract_strided_slice %12 {offsets = [40, 0], sizes = [8, 128], strides = [1, 1]} : vector<64x128xf32> to vector<8x128xf32>
    %cst_30 = arith.constant dense<0.000000e+00> : vector<8x128xf32>
    %158 = tpu.matmul %153, %13, %cst_30 {dimension_numbers = #tpu.dot_dimension_numbers<[1], [0], [0], [1], [0, 0, 1, 1], [], []>} : vector<8x32xf32>, vector<32x128xf32>, vector<8x128xf32> -> vector<8x128xf32>
    %159 = arith.addf %157, %158 : vector<8x128xf32>
    %160 = vector.extract_strided_slice %159 {offsets = [0, 0], sizes = [8, 96], strides = [1, 1]} : vector<8x128xf32> to vector<8x96xf32>
    %161 = arith.negf %160 : vector<8x96xf32>
    %162 = math.exp %161 : vector<8x96xf32>
    %cst_31 = arith.constant 1.000000e+00 : f32
    %163 = vector.broadcast %cst_31 : f32 to vector<8x96xf32>
    %164 = arith.addf %163, %162 : vector<8x96xf32>
    %165 = arith.divf %163, %164 : vector<8x96xf32>
    %166 = vector.extract_strided_slice %159 {offsets = [0, 96], sizes = [8, 32], strides = [1, 1]} : vector<8x128xf32> to vector<8x32xf32>
    %167 = math.tanh %166 : vector<8x32xf32>
    %168 = vector.extract_strided_slice %165 {offsets = [0, 0], sizes = [8, 32], strides = [1, 1]} : vector<8x96xf32> to vector<8x32xf32>
    %169 = vector.extract_strided_slice %165 {offsets = [0, 32], sizes = [8, 32], strides = [1, 1]} : vector<8x96xf32> to vector<8x32xf32>
    %170 = vector.extract_strided_slice %165 {offsets = [0, 64], sizes = [8, 32], strides = [1, 1]} : vector<8x96xf32> to vector<8x32xf32>
    %171 = arith.mulf %169, %156 : vector<8x32xf32>
    %172 = arith.mulf %168, %167 : vector<8x32xf32>
    %173 = arith.addf %171, %172 : vector<8x32xf32>
    %174 = math.tanh %173 : vector<8x32xf32>
    %175 = arith.mulf %170, %174 : vector<8x32xf32>
    %c40 = arith.constant 40 : index
    %c0_32 = arith.constant 0 : index
    %176 = vector.load %arg10[%c40, %c0_32] : memref<64x32xf32, #tpu.memory_space<vmem>>, vector<8x32xf32>
    tpu.vector_store %arg10[%c40, %c0_32], %175 {strides = array<i32>} : memref<64x32xf32, #tpu.memory_space<vmem>>, vector<8x32xf32>,
    %c5_i32 = arith.constant 5 : i32
    %177 = vector.broadcast %c5_i32 : i32 to vector<8x1xi32>
    %178 = arith.cmpi sgt, %14, %177 : vector<8x1xi32>
    %179 = vector.shape_cast %178 : vector<8x1xi1> to vector<8x1xi1>
    %180 = vector.broadcast %179 : vector<8x1xi1> to vector<8x32xi1>
    %181 = arith.select %180, %175, %153 : vector<8x32xi1>, vector<8x32xf32>
    %182 = vector.shape_cast %178 : vector<8x1xi1> to vector<8x1xi1>
    %183 = vector.broadcast %182 : vector<8x1xi1> to vector<8x32xi1>
    %184 = arith.select %183, %173, %156 : vector<8x32xi1>, vector<8x32xf32>
    %185 = vector.extract_strided_slice %12 {offsets = [48, 0], sizes = [8, 128], strides = [1, 1]} : vector<64x128xf32> to vector<8x128xf32>
    %cst_33 = arith.constant dense<0.000000e+00> : vector<8x128xf32>
    %186 = tpu.matmul %181, %13, %cst_33 {dimension_numbers = #tpu.dot_dimension_numbers<[1], [0], [0], [1], [0, 0, 1, 1], [], []>} : vector<8x32xf32>, vector<32x128xf32>, vector<8x128xf32> -> vector<8x128xf32>
    %187 = arith.addf %185, %186 : vector<8x128xf32>
    %188 = vector.extract_strided_slice %187 {offsets = [0, 0], sizes = [8, 96], strides = [1, 1]} : vector<8x128xf32> to vector<8x96xf32>
    %189 = arith.negf %188 : vector<8x96xf32>
    %190 = math.exp %189 : vector<8x96xf32>
    %cst_34 = arith.constant 1.000000e+00 : f32
    %191 = vector.broadcast %cst_34 : f32 to vector<8x96xf32>
    %192 = arith.addf %191, %190 : vector<8x96xf32>
    %193 = arith.divf %191, %192 : vector<8x96xf32>
    %194 = vector.extract_strided_slice %187 {offsets = [0, 96], sizes = [8, 32], strides = [1, 1]} : vector<8x128xf32> to vector<8x32xf32>
    %195 = math.tanh %194 : vector<8x32xf32>
    %196 = vector.extract_strided_slice %193 {offsets = [0, 0], sizes = [8, 32], strides = [1, 1]} : vector<8x96xf32> to vector<8x32xf32>
    %197 = vector.extract_strided_slice %193 {offsets = [0, 32], sizes = [8, 32], strides = [1, 1]} : vector<8x96xf32> to vector<8x32xf32>
    %198 = vector.extract_strided_slice %193 {offsets = [0, 64], sizes = [8, 32], strides = [1, 1]} : vector<8x96xf32> to vector<8x32xf32>
    %199 = arith.mulf %197, %184 : vector<8x32xf32>
    %200 = arith.mulf %196, %195 : vector<8x32xf32>
    %201 = arith.addf %199, %200 : vector<8x32xf32>
    %202 = math.tanh %201 : vector<8x32xf32>
    %203 = arith.mulf %198, %202 : vector<8x32xf32>
    %c48 = arith.constant 48 : index
    %c0_35 = arith.constant 0 : index
    %204 = vector.load %arg10[%c48, %c0_35] : memref<64x32xf32, #tpu.memory_space<vmem>>, vector<8x32xf32>
    tpu.vector_store %arg10[%c48, %c0_35], %203 {strides = array<i32>} : memref<64x32xf32, #tpu.memory_space<vmem>>, vector<8x32xf32>,
    %c6_i32 = arith.constant 6 : i32
    %205 = vector.broadcast %c6_i32 : i32 to vector<8x1xi32>
    %206 = arith.cmpi sgt, %14, %205 : vector<8x1xi32>
    %207 = vector.shape_cast %206 : vector<8x1xi1> to vector<8x1xi1>
    %208 = vector.broadcast %207 : vector<8x1xi1> to vector<8x32xi1>
    %209 = arith.select %208, %203, %181 : vector<8x32xi1>, vector<8x32xf32>
    %210 = vector.shape_cast %206 : vector<8x1xi1> to vector<8x1xi1>
    %211 = vector.broadcast %210 : vector<8x1xi1> to vector<8x32xi1>
    %212 = arith.select %211, %201, %184 : vector<8x32xi1>, vector<8x32xf32>
    %213 = vector.extract_strided_slice %12 {offsets = [56, 0], sizes = [8, 128], strides = [1, 1]} : vector<64x128xf32> to vector<8x128xf32>
    %cst_36 = arith.constant dense<0.000000e+00> : vector<8x128xf32>
    %214 = tpu.matmul %209, %13, %cst_36 {dimension_numbers = #tpu.dot_dimension_numbers<[1], [0], [0], [1], [0, 0, 1, 1], [], []>} : vector<8x32xf32>, vector<32x128xf32>, vector<8x128xf32> -> vector<8x128xf32>
    %215 = arith.addf %213, %214 : vector<8x128xf32>
    %216 = vector.extract_strided_slice %215 {offsets = [0, 0], sizes = [8, 96], strides = [1, 1]} : vector<8x128xf32> to vector<8x96xf32>
    %217 = arith.negf %216 : vector<8x96xf32>
    %218 = math.exp %217 : vector<8x96xf32>
    %cst_37 = arith.constant 1.000000e+00 : f32
    %219 = vector.broadcast %cst_37 : f32 to vector<8x96xf32>
    %220 = arith.addf %219, %218 : vector<8x96xf32>
    %221 = arith.divf %219, %220 : vector<8x96xf32>
    %222 = vector.extract_strided_slice %215 {offsets = [0, 96], sizes = [8, 32], strides = [1, 1]} : vector<8x128xf32> to vector<8x32xf32>
    %223 = math.tanh %222 : vector<8x32xf32>
    %224 = vector.extract_strided_slice %221 {offsets = [0, 0], sizes = [8, 32], strides = [1, 1]} : vector<8x96xf32> to vector<8x32xf32>
    %225 = vector.extract_strided_slice %221 {offsets = [0, 32], sizes = [8, 32], strides = [1, 1]} : vector<8x96xf32> to vector<8x32xf32>
    %226 = vector.extract_strided_slice %221 {offsets = [0, 64], sizes = [8, 32], strides = [1, 1]} : vector<8x96xf32> to vector<8x32xf32>
    %227 = arith.mulf %225, %212 : vector<8x32xf32>
    %228 = arith.mulf %224, %223 : vector<8x32xf32>
    %229 = arith.addf %227, %228 : vector<8x32xf32>
    %230 = math.tanh %229 : vector<8x32xf32>
    %231 = arith.mulf %226, %230 : vector<8x32xf32>
    %c56 = arith.constant 56 : index
    %c0_38 = arith.constant 0 : index
    %232 = vector.load %arg10[%c56, %c0_38] : memref<64x32xf32, #tpu.memory_space<vmem>>, vector<8x32xf32>
    tpu.vector_store %arg10[%c56, %c0_38], %231 {strides = array<i32>} : memref<64x32xf32, #tpu.memory_space<vmem>>, vector<8x32xf32>,
    %c0_39 = arith.constant 0 : index
    %c0_40 = arith.constant 0 : index
    %233 = vector.load %arg10[%c0_39, %c0_40] : memref<64x32xf32, #tpu.memory_space<vmem>>, vector<64x32xf32>
    %c0_41 = arith.constant 0 : index
    %c0_42 = arith.constant 0 : index
    %234 = vector.load %arg2[%c0_41, %c0_42] : memref<64x1xf32, #tpu.memory_space<vmem>>, vector<64x1xf32>
    %235 = vector.broadcast %234 : vector<64x1xf32> to vector<64x32xf32>
    %236 = arith.mulf %233, %235 : vector<64x32xf32>
    %c0_43 = arith.constant 0 : index
    %c0_44 = arith.constant 0 : index
    %237 = vector.load %arg7[%c0_43, %c0_44] : memref<32x128xf32, #tpu.memory_space<vmem>>, vector<32x128xf32>
    %cst_45 = arith.constant dense<0.000000e+00> : vector<64x128xf32>
    %238 = tpu.matmul %236, %237, %cst_45 {dimension_numbers = #tpu.dot_dimension_numbers<[1], [0], [0], [1], [0, 0, 1, 1], [], []>} : vector<64x32xf32>, vector<32x128xf32>, vector<64x128xf32> -> vector<64x128xf32>
    %c0_46 = arith.constant 0 : index
    %c0_47 = arith.constant 0 : index
    %239 = vector.load %arg8[%c0_46, %c0_47] : memref<1x128xf32, #tpu.memory_space<vmem>>, vector<1x128xf32>
    %240 = vector.broadcast %239 : vector<1x128xf32> to vector<64x128xf32>
    %241 = arith.addf %238, %240 : vector<64x128xf32>
    %c0_48 = arith.constant 0 : index
    %c0_49 = arith.constant 0 : index
    %242 = vector.load %arg9[%c0_48, %c0_49] : memref<64x128xf32, #tpu.memory_space<vmem>>, vector<64x128xf32>
    tpu.vector_store %arg9[%c0_48, %c0_49], %241 {strides = array<i32>} : memref<64x128xf32, #tpu.memory_space<vmem>>, vector<64x128xf32>,
    return
  }
}

</mosaic_0001>

<llo_original>
// kernel: tpu_custom_call.1
$region0: #{tpu_custom_call.1}
  #allocation0 [shape = 'u32[]', space=smem, size = 0x4, offset = 0x4, fixed_abs, tag = 'smem constant byte address 0x4 - core index']
  #allocation1 [shape = 'u32[144,128]{1,0:T(1,128)}', space=vmem, size = 0x12000, scoped, tag = 'internal scratch']
  #allocation2 [shape = 'f32[64,32]{1,0:T(8,128)}', space=vmem, size = 0x8000, scoped, tag = 'scratch operand']
  %s0 = inlined_call_operand.vmem [shape: s32[64,1], index: 0, kind: input, shape index: {}]
  %s1 = inlined_call_operand.vmem [shape: s32[8,1], index: 1, kind: input, shape index: {}]
  %s2 = inlined_call_operand.vmem [shape: f32[64,1], index: 2, kind: input, shape index: {}]
  %s3 = inlined_call_operand.vmem [shape: f32[50,16], index: 3, kind: input, shape index: {}]
  %s4 = inlined_call_operand.vmem [shape: f32[16,128], index: 4, kind: input, shape index: {}]
  %s5 = inlined_call_operand.vmem [shape: f32[32,128], index: 5, kind: input, shape index: {}]
  %s6 = inlined_call_operand.vmem [shape: f32[1,128], index: 6, kind: input, shape index: {}]
  %s7 = inlined_call_operand.vmem [shape: f32[32,128], index: 7, kind: input, shape index: {}]
  %s8 = inlined_call_operand.vmem [shape: f32[1,128], index: 8, kind: input, shape index: {}]
  %s9 = inlined_call_operand.hbm [shape: f32[64,128], index: 9, kind: output, shape index: {}]
  %s10 = sld [smem:[#allocation0]]
  $region46: #{tpu_custom_call.1} parent=0
    _
  %s12 = ssub.s32 1, %s10
  %s13 = scalar_select 0, %s12, %s10
  $region1: #{tpu_custom_call.1} parent=0
    #allocation3 [shape = 'u8[32768]{0}', space=vmem, size = 0x8000, scoped, tag = 'output window, operand 0, single buffered']
    #allocation4 [shape = 's32[1]{0}', space=sflag, size = 0x4, scoped, tag = 'scoped memory for tpu_custom_call.1']
    %14 = vsyncpa [#allocation4], 0
    // Predicated region
    $region2: #{tpu_custom_call.1} parent=1 // pred_check
      _
    $region3: #{tpu_custom_call.1} parent=1 // pred_check_branch
      %16 = sbr.rel (0) target = $region5
    $region4: #{tpu_custom_call.1} parent=1 // pred_region
      _
    $region5: #{tpu_custom_call.1} parent=1 // pred_fallthru
      _
    // Predicated region
    $region6: #{tpu_custom_call.1} parent=1 // pred_check
      _
    $region7: #{tpu_custom_call.1} parent=1 // pred_check_branch
      %18 = sbr.rel (0) target = $region9
    $region8: #{tpu_custom_call.1} parent=1 // pred_region
      _
    $region9: #{tpu_custom_call.1} parent=1 // pred_fallthru
      _
    // Predicated region
    $region10: #{tpu_custom_call.1} parent=1 // pred_check
      _
    $region11: #{tpu_custom_call.1} parent=1 // pred_check_branch
      %20 = sbr.rel (0) target = $region13
    $region12: #{tpu_custom_call.1} parent=1 // pred_region
      _
    $region13: #{tpu_custom_call.1} parent=1 // pred_fallthru
      _
    // Predicated region
    $region14: #{tpu_custom_call.1} parent=1 // pred_check
      _
    $region15: #{tpu_custom_call.1} parent=1 // pred_check_branch
      %22 = sbr.rel (0) target = $region17
    $region16: #{tpu_custom_call.1} parent=1 // pred_region
      _
    $region17: #{tpu_custom_call.1} parent=1 // pred_fallthru
      _
    // Predicated region
    $region18: #{tpu_custom_call.1} parent=1 // pred_check
      _
    $region19: #{tpu_custom_call.1} parent=1 // pred_check_branch
      %24 = sbr.rel (0) target = $region21
    $region20: #{tpu_custom_call.1} parent=1 // pred_region
      _
    $region21: #{tpu_custom_call.1} parent=1 // pred_fallthru
      _
    // Predicated region
    $region22: #{tpu_custom_call.1} parent=1 // pred_check
      _
    $region23: #{tpu_custom_call.1} parent=1 // pred_check_branch
      %26 = sbr.rel (0) target = $region25
    $region24: #{tpu_custom_call.1} parent=1 // pred_region
      _
    $region25: #{tpu_custom_call.1} parent=1 // pred_fallthru
      _
    // Predicated region
    $region26: #{tpu_custom_call.1} parent=1 // pred_check
      _
    $region27: #{tpu_custom_call.1} parent=1 // pred_check_branch
      %28 = sbr.rel (0) target = $region29
    $region28: #{tpu_custom_call.1} parent=1 // pred_region
      _
    $region29: #{tpu_custom_call.1} parent=1 // pred_fallthru
      _
    // Predicated region
    $region30: #{tpu_custom_call.1} parent=1 // pred_check
      _
    $region31: #{tpu_custom_call.1} parent=1 // pred_check_branch
      %30 = sbr.rel (0) target = $region33
    $region32: #{tpu_custom_call.1} parent=1 // pred_region
      _
    $region33: #{tpu_custom_call.1} parent=1 // pred_fallthru
      _
    // Predicated region
    $region34: #{tpu_custom_call.1} parent=1 // pred_check
      _
    $region35: #{tpu_custom_call.1} parent=1 // pred_check_branch
      %32 = sbr.rel (0) target = $region37
    $region36: #{tpu_custom_call.1} parent=1 // pred_region
      _
    $region37: #{tpu_custom_call.1} parent=1 // pred_fallthru
      _
    %v33 = vlaneseq
    %v34 = vand.u32 %v33, 127
    %v35 = vld [vmem:[%s0] sm:$0xff]
    %v36 = vld [vmem:[%s0 + $0x8] sm:$0xff]
    %v37 = vld [vmem:[%s0 + $0x10] sm:$0xff]
    %v38 = vld [vmem:[%s0 + $0x18] sm:$0xff]
    %v39 = vld [vmem:[%s0 + $0x20] sm:$0xff]
    %v40 = vld [vmem:[%s0 + $0x28] sm:$0xff]
    %v41 = vld [vmem:[%s0 + $0x30] sm:$0xff]
    %v42 = vld [vmem:[%s0 + $0x38] sm:$0xff]
    %43 = vset.pattern.permute.xlu0 0
    %44 = vperm.xlu0 %43, %v35
    %v45 = vpop.permute.xlu0 %44
    %46 = vset.pattern.permute.xlu0 0
    %47 = vperm.xlu0 %46, %v36
    %v48 = vpop.permute.xlu0 %47
    %49 = vset.pattern.permute.xlu0 0
    %50 = vperm.xlu0 %49, %v37
    %v51 = vpop.permute.xlu0 %50
    %52 = vset.pattern.permute.xlu0 0
    %53 = vperm.xlu0 %52, %v38
    %v54 = vpop.permute.xlu0 %53
    %55 = vset.pattern.permute.xlu0 0
    %56 = vperm.xlu0 %55, %v39
    %v57 = vpop.permute.xlu0 %56
    %58 = vset.pattern.permute.xlu0 0
    %59 = vperm.xlu0 %58, %v40
    %v60 = vpop.permute.xlu0 %59
    %61 = vset.pattern.permute.xlu0 0
    %62 = vperm.xlu0 %61, %v41
    %v63 = vpop.permute.xlu0 %62
    %64 = vset.pattern.permute.xlu0 0
    %65 = vperm.xlu0 %64, %v42
    %v66 = vpop.permute.xlu0 %65
    %vm67 = vcmp.eq.s32.totalorder %v34, %v45
    %vm68 = vcmp.eq.s32.totalorder %v34, %v48
    %vm69 = vcmp.eq.s32.totalorder %v34, %v51
    %vm70 = vcmp.eq.s32.totalorder %v34, %v54
    %vm71 = vcmp.eq.s32.totalorder %v34, %v57
    %vm72 = vcmp.eq.s32.totalorder %v34, %v60
    %vm73 = vcmp.eq.s32.totalorder %v34, %v63
    %vm74 = vcmp.eq.s32.totalorder %v34, %v66
    %v75 = vsel %vm67, 1, 0
    %v76 = vsel %vm68, 1, 0
    %v77 = vsel %vm69, 1, 0
    %v78 = vsel %vm70, 1, 0
    %v79 = vsel %vm71, 1, 0
    %v80 = vsel %vm72, 1, 0
    %v81 = vsel %vm73, 1, 0
    %v82 = vsel %vm74, 1, 0
    %v83 = vcvt.s32.f32 %v75
    %v84 = vcvt.s32.f32 %v76
    %v85 = vcvt.s32.f32 %v77
    %v86 = vcvt.s32.f32 %v78
    %v87 = vcvt.s32.f32 %v79
    %v88 = vcvt.s32.f32 %v80
    %v89 = vcvt.s32.f32 %v81
    %v90 = vcvt.s32.f32 %v82
    %v91 = vld [vmem:[%s3] sm:$0xff]
    %v92 = vld [vmem:[%s3 + $0x8] sm:$0xff]
    %v93 = vld [vmem:[%s3 + $0x10] sm:$0xff]
    %v94 = vld [vmem:[%s3 + $0x18] sm:$0xff]
    %v95 = vld [vmem:[%s3 + $0x20] sm:$0xff]
    %v96 = vld [vmem:[%s3 + $0x28] sm:$0xff]
    %v97 = vld [vmem:[%s3 + $0x30] sm:$0x3]
    %v98 = vld [vmem:[%s4] sm:$0xff]
    %v99 = vld [vmem:[%s4 + $0x8] sm:$0xff]
    %vm100 = vcmask 130048
    %v102 = vsel %vm100, %v91, 0
    %v105 = vsel %vm100, %v92, 0
    %v108 = vsel %vm100, %v93, 0
    %v111 = vsel %vm100, %v94, 0
    %v114 = vsel %vm100, %v95, 0
    %v117 = vsel %vm100, %v96, 0
    %v120 = vsel %vm100, %v97, 0
    %122 = vmatprep.subr.mxu0 0.0
    %123 = vmatpush1.msra.mxu0 %v98
    %124 = vmatprep.subr.mxu0 0.0
    %125 = vmatpush1.msra.mxu0 %v99
    %126 = vmatprep.subr.mxu0 0.0
    %127 = vmatpush1.msra.mxu0 0.0
    %128 = vmatprep.subr.mxu0 0.0
    %129 = vmatpush1.msra.mxu0 0.0
    %130 = vmatprep.subr.mxu0 0.0
    %131 = vmatpush1.msra.mxu0 0.0
    %132 = vmatprep.subr.mxu0 0.0
    %133 = vmatpush1.msra.mxu0 0.0
    %134 = vmatprep.subr.mxu0 0.0
    %135 = vmatpush1.msra.mxu0 0.0
    %136 = vmatprep.subr.mxu0 0.0
    %137 = vmatpush1.msra.mxu0 0.0
    %138 = vmatprep.subr.mxu0 0.0
    %139 = vmatpush1.msra.mxu0 0.0
    %140 = vmatprep.subr.mxu0 0.0
    %141 = vmatpush1.msra.mxu0 0.0
    %142 = vmatprep.subr.mxu0 0.0
    %143 = vmatpush1.msra.mxu0 0.0
    %144 = vmatprep.subr.mxu0 0.0
    %145 = vmatpush1.msra.mxu0 0.0
    %146 = vmatprep.subr.mxu0 0.0
    %147 = vmatpush1.msra.mxu0 0.0
    %148 = vmatprep.subr.mxu0 0.0
    %149 = vmatpush1.msra.mxu0 0.0
    %150 = vmatprep.subr.mxu0 0.0
    %151 = vmatpush1.msra.mxu0 0.0
    %152 = vmatprep.subr.mxu0 0.0
    %153 = vmatpush1.msra.mxu0 0.0
    %154 = vmatprep.subr.mxu0 0.0
    %155 = vmatpush1.msra.mxu0 0.0
    %156 = vmatprep.subr.mxu0 0.0
    %157 = vmatpush1.msra.mxu0 0.0
    %158 = vmatprep.subr.mxu0 0.0
    %159 = vmatpush1.msra.mxu0 0.0
    %160 = vmatprep.subr.mxu0 0.0
    %161 = vmatpush1.msra.mxu0 0.0
    %162 = vmatprep.subr.mxu0 0.0
    %163 = vmatpush1.msra.mxu0 0.0
    %164 = vmatprep.subr.mxu0 0.0
    %165 = vmatpush1.msra.mxu0 0.0
    %166 = vmatprep.subr.mxu0 0.0
    %167 = vmatpush1.msra.mxu0 0.0
    %168 = vmatprep.subr.mxu0 0.0
    %169 = vmatpush1.msra.mxu0 0.0
    %170 = vmatprep.subr.mxu0 0.0
    %171 = vmatpush1.msra.mxu0 0.0
    %172 = vmatprep.subr.mxu0 0.0
    %173 = vmatpush1.msra.mxu0 0.0
    %174 = vmatprep.subr.mxu0 0.0
    %175 = vmatpush1.msra.mxu0 0.0
    %176 = vmatprep.subr.mxu0 0.0
    %177 = vmatpush1.msra.mxu0 0.0
    %178 = vmatprep.subr.mxu0 0.0
    %179 = vmatpush1.msra.mxu0 0.0
    %180 = vmatprep.subr.mxu0 0.0
    %181 = vmatpush1.msra.mxu0 0.0
    %182 = vmatprep.subr.mxu0 0.0
    %183 = vmatpush1.msra.mxu0 0.0
    %184 = vmatprep.subr.mxu0 0.0
    %185 = vmatpush1.msra.mxu0 0.0
    %186 = vmatprep.mubr.f32.mxu0 0.0
    %187 = vmatmul.mubr.f32.gmra.mrb[0].mxu0 %v102
    %v188 = vpop.f32.mrb[0].mxu0
    %v189 = vadd.f32 0.0, %v188
    %v190 = vpop.f32.mrb[0].mxu0
    %191 = vmatprep.mubr.f32.mxu0 0.0
    %192 = vmatmul.mubr.f32.gmra.mrb[0].mxu0 %v105
    %v193 = vpop.f32.mrb[0].mxu0
    %v194 = vadd.f32 0.0, %v193
    %v195 = vpop.f32.mrb[0].mxu0
    %196 = vmatprep.mubr.f32.mxu0 0.0
    %197 = vmatmul.mubr.f32.gmra.mrb[0].mxu0 %v108
    %v198 = vpop.f32.mrb[0].mxu0
    %v199 = vadd.f32 0.0, %v198
    %v200 = vpop.f32.mrb[0].mxu0
    %201 = vmatprep.mubr.f32.mxu0 0.0
    %202 = vmatmul.mubr.f32.gmra.mrb[0].mxu0 %v111
    %v203 = vpop.f32.mrb[0].mxu0
    %v204 = vadd.f32 0.0, %v203
    %v205 = vpop.f32.mrb[0].mxu0
    %206 = vmatprep.mubr.f32.mxu0 0.0
    %207 = vmatmul.mubr.f32.gmra.mrb[0].mxu0 %v114
    %v208 = vpop.f32.mrb[0].mxu0
    %v209 = vadd.f32 0.0, %v208
    %v210 = vpop.f32.mrb[0].mxu0
    %211 = vmatprep.mubr.f32.mxu0 0.0
    %212 = vmatmul.mubr.f32.gmra.mrb[0].mxu0 %v117
    %v213 = vpop.f32.mrb[0].mxu0
    %v214 = vadd.f32 0.0, %v213
    %v215 = vpop.f32.mrb[0].mxu0
    %216 = vmatprep.mubr.f32.mxu0 0.0
    %217 = vmatmul.mubr.f32.gmra.mrb[0].mxu0 %v120
    %v218 = vpop.f32.mrb[0].mxu0
    %v219 = vadd.f32 0.0, %v218
    %v220 = vpop.f32.mrb[0].mxu0
    %221 = vdwg.mxu0
    %v222 = vld [vmem:[%s6] sm:$0x1]
    %v224 = vlaneseq
    %v225 = vshrl.u32 %v224, 7
    %v226 = vsub.s32 0, %v225
    %v227 = vrot.slane %v222, %v226
    %vm229 = vcmask 408576
    %v231 = vsel %vm229, %v83, 0
    %v234 = vsel %vm229, %v84, 0
    %v237 = vsel %vm229, %v85, 0
    %v240 = vsel %vm229, %v86, 0
    %v243 = vsel %vm229, %v87, 0
    %v246 = vsel %vm229, %v88, 0
    %v249 = vsel %vm229, %v89, 0
    %v252 = vsel %vm229, %v90, 0
    %vm254 = vcmask 1041408
    %v256 = vsel %vm254, %v219, 0
    %258 = vmatprep.subr.mxu0 0.0
    %259 = vmatpush1.msra.mxu0 %v189
    %260 = vmatprep.subr.mxu0 0.0
    %261 = vmatpush1.msra.mxu0 %v194
    %262 = vmatprep.subr.mxu0 0.0
    %263 = vmatpush1.msra.mxu0 %v199
    %264 = vmatprep.subr.mxu0 0.0
    %265 = vmatpush1.msra.mxu0 %v204
    %266 = vmatprep.subr.mxu0 0.0
    %267 = vmatpush1.msra.mxu0 %v209
    %268 = vmatprep.subr.mxu0 0.0
    %269 = vmatpush1.msra.mxu0 %v214
    %270 = vmatprep.subr.mxu0 0.0
    %271 = vmatpush1.msra.mxu0 %v256
    %272 = vmatprep.subr.mxu0 0.0
    %273 = vmatpush1.msra.mxu0 0.0
    %274 = vmatprep.subr.mxu0 0.0
    %275 = vmatpush1.msra.mxu0 0.0
    %276 = vmatprep.subr.mxu0 0.0
    %277 = vmatpush1.msra.mxu0 0.0
    %278 = vmatprep.subr.mxu0 0.0
    %279 = vmatpush1.msra.mxu0 0.0
    %280 = vmatprep.subr.mxu0 0.0
    %281 = vmatpush1.msra.mxu0 0.0
    %282 = vmatprep.subr.mxu0 0.0
    %283 = vmatpush1.msra.mxu0 0.0
    %284 = vmatprep.subr.mxu0 0.0
    %285 = vmatpush1.msra.mxu0 0.0
    %286 = vmatprep.subr.mxu0 0.0
    %287 = vmatpush1.msra.mxu0 0.0
    %288 = vmatprep.subr.mxu0 0.0
    %289 = vmatpush1.msra.mxu0 0.0
    %290 = vmatprep.subr.mxu0 0.0
    %291 = vmatpush1.msra.mxu0 0.0
    %292 = vmatprep.subr.mxu0 0.0
    %293 = vmatpush1.msra.mxu0 0.0
    %294 = vmatprep.subr.mxu0 0.0
    %295 = vmatpush1.msra.mxu0 0.0
    %296 = vmatprep.subr.mxu0 0.0
    %297 = vmatpush1.msra.mxu0 0.0
    %298 = vmatprep.subr.mxu0 0.0
    %299 = vmatpush1.msra.mxu0 0.0
    %300 = vmatprep.subr.mxu0 0.0
    %301 = vmatpush1.msra.mxu0 0.0
    %302 = vmatprep.subr.mxu0 0.0
    %303 = vmatpush1.msra.mxu0 0.0
    %304 = vmatprep.subr.mxu0 0.0
    %305 = vmatpush1.msra.mxu0 0.0
    %306 = vmatprep.subr.mxu0 0.0
    %307 = vmatpush1.msra.mxu0 0.0
    %308 = vmatprep.subr.mxu0 0.0
    %309 = vmatpush1.msra.mxu0 0.0
    %310 = vmatprep.subr.mxu0 0.0
    %311 = vmatpush1.msra.mxu0 0.0
    %312 = vmatprep.subr.mxu0 0.0
    %313 = vmatpush1.msra.mxu0 0.0
    %314 = vmatprep.subr.mxu0 0.0
    %315 = vmatpush1.msra.mxu0 0.0
    %316 = vmatprep.subr.mxu0 0.0
    %317 = vmatpush1.msra.mxu0 0.0
    %318 = vmatprep.subr.mxu0 0.0
    %319 = vmatpush1.msra.mxu0 0.0
    %320 = vmatprep.subr.mxu0 0.0
    %321 = vmatpush1.msra.mxu0 0.0
    %322 = vmatprep.mubr.f32.mxu0 0.0
    %323 = vmatmul.mubr.f32.gmra.mrb[0].mxu0 %v231
    %v324 = vpop.f32.mrb[0].mxu0
    %v325 = vadd.f32 %v227, %v324
    %v326 = vpop.f32.mrb[0].mxu0
    %327 = vmatprep.mubr.f32.mxu0 0.0
    %328 = vmatmul.mubr.f32.gmra.mrb[0].mxu0 %v234
    %v329 = vpop.f32.mrb[0].mxu0
    %v330 = vadd.f32 %v227, %v329
    %v331 = vpop.f32.mrb[0].mxu0
    %332 = vmatprep.mubr.f32.mxu0 0.0
    %333 = vmatmul.mubr.f32.gmra.mrb[0].mxu0 %v237
    %v334 = vpop.f32.mrb[0].mxu0
    %v335 = vadd.f32 %v227, %v334
    %v336 = vpop.f32.mrb[0].mxu0
    %337 = vmatprep.mubr.f32.mxu0 0.0
    %338 = vmatmul.mubr.f32.gmra.mrb[0].mxu0 %v240
    %v339 = vpop.f32.mrb[0].mxu0
    %v340 = vadd.f32 %v227, %v339
    %v341 = vpop.f32.mrb[0].mxu0
    %342 = vmatprep.mubr.f32.mxu0 0.0
    %343 = vmatmul.mubr.f32.gmra.mrb[0].mxu0 %v243
    %v344 = vpop.f32.mrb[0].mxu0
    %v345 = vadd.f32 %v227, %v344
    %v346 = vpop.f32.mrb[0].mxu0
    %347 = vmatprep.mubr.f32.mxu0 0.0
    %348 = vmatmul.mubr.f32.gmra.mrb[0].mxu0 %v246
    %v349 = vpop.f32.mrb[0].mxu0
    %v350 = vadd.f32 %v227, %v349
    %v351 = vpop.f32.mrb[0].mxu0
    %352 = vmatprep.mubr.f32.mxu0 0.0
    %353 = vmatmul.mubr.f32.gmra.mrb[0].mxu0 %v249
    %v354 = vpop.f32.mrb[0].mxu0
    %v355 = vadd.f32 %v227, %v354
    %v356 = vpop.f32.mrb[0].mxu0
    %357 = vmatprep.mubr.f32.mxu0 0.0
    %358 = vmatmul.mubr.f32.gmra.mrb[0].mxu0 %v252
    %v359 = vpop.f32.mrb[0].mxu0
    %v360 = vadd.f32 %v227, %v359
    %v361 = vpop.f32.mrb[0].mxu0
    %362 = vdwg.mxu0
    %v363 = vld [vmem:[%s5] sm:$0xff]
    %v364 = vld [vmem:[%s5 + $0x8] sm:$0xff]
    %v365 = vld [vmem:[%s5 + $0x10] sm:$0xff]
    %v366 = vld [vmem:[%s5 + $0x18] sm:$0xff]
    %v367 = vld [vmem:[%s1] sm:$0xff]
    %vm368 = vcmask 261120
    %v370 = vsel %vm368, 0.0, 0
    %372 = vmatprep.subr.mxu0 0.0
    %373 = vmatpush1.msra.mxu0 %v363
    %374 = vmatprep.subr.mxu0 0.0
    %375 = vmatpush1.msra.mxu0 %v364
    %376 = vmatprep.subr.mxu0 0.0
    %377 = vmatpush1.msra.mxu0 %v365
    %378 = vmatprep.subr.mxu0 0.0
    %379 = vmatpush1.msra.mxu0 %v366
    %380 = vmatprep.subr.mxu0 0.0
    %381 = vmatpush1.msra.mxu0 0.0
    %382 = vmatprep.subr.mxu0 0.0
    %383 = vmatpush1.msra.mxu0 0.0
    %384 = vmatprep.subr.mxu0 0.0
    %385 = vmatpush1.msra.mxu0 0.0
    %386 = vmatprep.subr.mxu0 0.0
    %387 = vmatpush1.msra.mxu0 0.0
    %388 = vmatprep.subr.mxu0 0.0
    %389 = vmatpush1.msra.mxu0 0.0
    %390 = vmatprep.subr.mxu0 0.0
    %391 = vmatpush1.msra.mxu0 0.0
    %392 = vmatprep.subr.mxu0 0.0
    %393 = vmatpush1.msra.mxu0 0.0
    %394 = vmatprep.subr.mxu0 0.0
    %395 = vmatpush1.msra.mxu0 0.0
    %396 = vmatprep.subr.mxu0 0.0
    %397 = vmatpush1.msra.mxu0 0.0
    %398 = vmatprep.subr.mxu0 0.0
    %399 = vmatpush1.msra.mxu0 0.0
    %400 = vmatprep.subr.mxu0 0.0
    %401 = vmatpush1.msra.mxu0 0.0
    %402 = vmatprep.subr.mxu0 0.0
    %403 = vmatpush1.msra.mxu0 0.0
    %404 = vmatprep.subr.mxu0 0.0
    %405 = vmatpush1.msra.mxu0 0.0
    %406 = vmatprep.subr.mxu0 0.0
    %407 = vmatpush1.msra.mxu0 0.0
    %408 = vmatprep.subr.mxu0 0.0
    %409 = vmatpush1.msra.mxu0 0.0
    %410 = vmatprep.subr.mxu0 0.0
    %411 = vmatpush1.msra.mxu0 0.0
    %412 = vmatprep.subr.mxu0 0.0
    %413 = vmatpush1.msra.mxu0 0.0
    %414 = vmatprep.subr.mxu0 0.0
    %415 = vmatpush1.msra.mxu0 0.0
    %416 = vmatprep.subr.mxu0 0.0
    %417 = vmatpush1.msra.mxu0 0.0
    %418 = vmatprep.subr.mxu0 0.0
    %419 = vmatpush1.msra.mxu0 0.0
    %420 = vmatprep.subr.mxu0 0.0
    %421 = vmatpush1.msra.mxu0 0.0
    %422 = vmatprep.subr.mxu0 0.0
    %423 = vmatpush1.msra.mxu0 0.0
    %424 = vmatprep.subr.mxu0 0.0
    %425 = vmatpush1.msra.mxu0 0.0
    %426 = vmatprep.subr.mxu0 0.0
    %427 = vmatpush1.msra.mxu0 0.0
    %428 = vmatprep.subr.mxu0 0.0
    %429 = vmatpush1.msra.mxu0 0.0
    %430 = vmatprep.subr.mxu0 0.0
    %431 = vmatpush1.msra.mxu0 0.0
    %432 = vmatprep.subr.mxu0 0.0
    %433 = vmatpush1.msra.mxu0 0.0
    %434 = vmatprep.subr.mxu0 0.0
    %435 = vmatpush1.msra.mxu0 0.0
    %436 = vmatprep.mubr.f32.mxu0 0.0
    %437 = vmatmul.mubr.f32.gmra.mrb[0].mxu0 %v370
    %v438 = vpop.f32.mrb[0].mxu0
    %v439 = vadd.f32 0.0, %v438
    %v440 = vpop.f32.mrb[0].mxu0
    %441 = vdwg.mxu0
    %v442 = vadd.f32 %v325, %v439
    %v443 = vxor.u32 %v442, 2147483648
    %v444 = vmul.f32 %v443, 1.442695
    %v445 = vpow.pop %v444
    %v446 = vadd.f32 %v445, 1.0
    %v447 = vrcp.pop %v446
    %v448 = vmul.f32 1.0, %v447
    %v449 = vtanh.pop %v442
    %v450 = vmul.f32 %v448, 0.0
    %452 = vrot.lane.b32.xlu0 %v449, 32
    %v453 = vpop.permute.xlu0 %452
    %v455 = vmul.f32 %v448, %v453
    %457 = vrot.lane.b32.xlu0 %v455, 32
    %v458 = vpop.permute.xlu0 %457
    %v460 = vadd.f32 %v450, %v458
    %v461 = vtanh.pop %v460
    %463 = vrot.lane.b32.xlu0 %v461, 32
    %v464 = vpop.permute.xlu0 %463
    %v466 = vmul.f32 %v448, %v464
    %468 = vrot.lane.b32.xlu0 %v466, 64
    %v469 = vpop.permute.xlu0 %468
    %471 = vst.msk [vmem:[#allocation2] sm:$0xff] %vm368, %v469
    %vm472 = vcmp.gt.s32.totalorder %v367, 0
    %v473 = vsel %vm472, 1, 0
    %474 = vset.pattern.permute.xlu0 0
    %475 = vperm.xlu0 %474, %v473
    %v476 = vpop.permute.xlu0 %475
    %vm477 = vcmp.eq.s32.totalorder %v476, 1
    %v478 = vsel %vm477, %v466, 0.0
    %v479 = vsel %vm477, %v460, 0.0
    %481 = vrot.lane.b32.xlu0 %v478, 64
    %v482 = vpop.permute.xlu0 %481
    %v483 = vsel %vm368, %v482, 0
    %485 = vmatprep.subr.mxu0 0.0
    %486 = vmatpush1.msra.mxu0 %v363
    %487 = vmatprep.subr.mxu0 0.0
    %488 = vmatpush1.msra.mxu0 %v364
    %489 = vmatprep.subr.mxu0 0.0
    %490 = vmatpush1.msra.mxu0 %v365
    %491 = vmatprep.subr.mxu0 0.0
    %492 = vmatpush1.msra.mxu0 %v366
    %493 = vmatprep.subr.mxu0 0.0
    %494 = vmatpush1.msra.mxu0 0.0
    %495 = vmatprep.subr.mxu0 0.0
    %496 = vmatpush1.msra.mxu0 0.0
    %497 = vmatprep.subr.mxu0 0.0
    %498 = vmatpush1.msra.mxu0 0.0
    %499 = vmatprep.subr.mxu0 0.0
    %500 = vmatpush1.msra.mxu0 0.0
    %501 = vmatprep.subr.mxu0 0.0
    %502 = vmatpush1.msra.mxu0 0.0
    %503 = vmatprep.subr.mxu0 0.0
    %504 = vmatpush1.msra.mxu0 0.0
    %505 = vmatprep.subr.mxu0 0.0
    %506 = vmatpush1.msra.mxu0 0.0
    %507 = vmatprep.subr.mxu0 0.0
    %508 = vmatpush1.msra.mxu0 0.0
    %509 = vmatprep.subr.mxu0 0.0
    %510 = vmatpush1.msra.mxu0 0.0
    %511 = vmatprep.subr.mxu0 0.0
    %512 = vmatpush1.msra.mxu0 0.0
    %513 = vmatprep.subr.mxu0 0.0
    %514 = vmatpush1.msra.mxu0 0.0
    %515 = vmatprep.subr.mxu0 0.0
    %516 = vmatpush1.msra.mxu0 0.0
    %517 = vmatprep.subr.mxu0 0.0
    %518 = vmatpush1.msra.mxu0 0.0
    %519 = vmatprep.subr.mxu0 0.0
    %520 = vmatpush1.msra.mxu0 0.0
    %521 = vmatprep.subr.mxu0 0.0
    %522 = vmatpush1.msra.mxu0 0.0
    %523 = vmatprep.subr.mxu0 0.0
    %524 = vmatpush1.msra.mxu0 0.0
    %525 = vmatprep.subr.mxu0 0.0
    %526 = vmatpush1.msra.mxu0 0.0
    %527 = vmatprep.subr.mxu0 0.0
    %528 = vmatpush1.msra.mxu0 0.0
    %529 = vmatprep.subr.mxu0 0.0
    %530 = vmatpush1.msra.mxu0 0.0
    %531 = vmatprep.subr.mxu0 0.0
    %532 = vmatpush1.msra.mxu0 0.0
    %533 = vmatprep.subr.mxu0 0.0
    %534 = vmatpush1.msra.mxu0 0.0
    %535 = vmatprep.subr.mxu0 0.0
    %536 = vmatpush1.msra.mxu0 0.0
    %537 = vmatprep.subr.mxu0 0.0
    %538 = vmatpush1.msra.mxu0 0.0
    %539 = vmatprep.subr.mxu0 0.0
    %540 = vmatpush1.msra.mxu0 0.0
    %541 = vmatprep.subr.mxu0 0.0
    %542 = vmatpush1.msra.mxu0 0.0
    %543 = vmatprep.subr.mxu0 0.0
    %544 = vmatpush1.msra.mxu0 0.0
    %545 = vmatprep.subr.mxu0 0.0
    %546 = vmatpush1.msra.mxu0 0.0
    %547 = vmatprep.subr.mxu0 0.0
    %548 = vmatpush1.msra.mxu0 0.0
    %549 = vmatprep.mubr.f32.mxu0 0.0
    %550 = vmatmul.mubr.f32.gmra.mrb[0].mxu0 %v483
    %v551 = vpop.f32.mrb[0].mxu0
    %v552 = vadd.f32 0.0, %v551
    %v553 = vpop.f32.mrb[0].mxu0
    %554 = vdwg.mxu0
    %v555 = vadd.f32 %v330, %v552
    %v556 = vxor.u32 %v555, 2147483648
    %v557 = vmul.f32 %v556, 1.442695
    %v558 = vpow.pop %v557
    %v559 = vadd.f32 %v558, 1.0
    %v560 = vrcp.pop %v559
    %v561 = vmul.f32 1.0, %v560
    %v562 = vtanh.pop %v555
    %v563 = vmul.f32 %v561, %v479
    %565 = vrot.lane.b32.xlu0 %v562, 32
    %v566 = vpop.permute.xlu0 %565
    %v568 = vmul.f32 %v561, %v566
    %570 = vrot.lane.b32.xlu0 %v568, 32
    %v571 = vpop.permute.xlu0 %570
    %v573 = vadd.f32 %v563, %v571
    %v574 = vtanh.pop %v573
    %576 = vrot.lane.b32.xlu0 %v574, 32
    %v577 = vpop.permute.xlu0 %576
    %v579 = vmul.f32 %v561, %v577
    %581 = vrot.lane.b32.xlu0 %v579, 64
    %v582 = vpop.permute.xlu0 %581
    %584 = vst.msk [vmem:[#allocation2 + $0x8] sm:$0xff] %vm368, %v582
    %vm585 = vcmp.gt.s32.totalorder %v367, 1
    %v586 = vsel %vm585, 1, 0
    %587 = vset.pattern.permute.xlu0 0
    %588 = vperm.xlu0 %587, %v586
    %v589 = vpop.permute.xlu0 %588
    %vm590 = vcmp.eq.s32.totalorder %v589, 1
    %v591 = vsel %vm590, %v579, %v478
    %v592 = vsel %vm590, %v573, %v479
    %594 = vrot.lane.b32.xlu0 %v591, 64
    %v595 = vpop.permute.xlu0 %594
    %v596 = vsel %vm368, %v595, 0
    %598 = vmatprep.subr.mxu0 0.0
    %599 = vmatpush1.msra.mxu0 %v363
    %600 = vmatprep.subr.mxu0 0.0
    %601 = vmatpush1.msra.mxu0 %v364
    %602 = vmatprep.subr.mxu0 0.0
    %603 = vmatpush1.msra.mxu0 %v365
    %604 = vmatprep.subr.mxu0 0.0
    %605 = vmatpush1.msra.mxu0 %v366
    %606 = vmatprep.subr.mxu0 0.0
    %607 = vmatpush1.msra.mxu0 0.0
    %608 = vmatprep.subr.mxu0 0.0
    %609 = vmatpush1.msra.mxu0 0.0
    %610 = vmatprep.subr.mxu0 0.0
    %611 = vmatpush1.msra.mxu0 0.0
    %612 = vmatprep.subr.mxu0 0.0
    %613 = vmatpush1.msra.mxu0 0.0
    %614 = vmatprep.subr.mxu0 0.0
    %615 = vmatpush1.msra.mxu0 0.0
    %616 = vmatprep.subr.mxu0 0.0
    %617 = vmatpush1.msra.mxu0 0.0
    %618 = vmatprep.subr.mxu0 0.0
    %619 = vmatpush1.msra.mxu0 0.0
    %620 = vmatprep.subr.mxu0 0.0
    %621 = vmatpush1.msra.mxu0 0.0
    %622 = vmatprep.subr.mxu0 0.0
    %623 = vmatpush1.msra.mxu0 0.0
    %624 = vmatprep.subr.mxu0 0.0
    %625 = vmatpush1.msra.mxu0 0.0
    %626 = vmatprep.subr.mxu0 0.0
    %627 = vmatpush1.msra.mxu0 0.0
    %628 = vmatprep.subr.mxu0 0.0
    %629 = vmatpush1.msra.mxu0 0.0
    %630 = vmatprep.subr.mxu0 0.0
    %631 = vmatpush1.msra.mxu0 0.0
    %632 = vmatprep.subr.mxu0 0.0
    %633 = vmatpush1.msra.mxu0 0.0
    %634 = vmatprep.subr.mxu0 0.0
    %635 = vmatpush1.msra.mxu0 0.0
    %636 = vmatprep.subr.mxu0 0.0
    %637 = vmatpush1.msra.mxu0 0.0
    %638 = vmatprep.subr.mxu0 0.0
    %639 = vmatpush1.msra.mxu0 0.0
    %640 = vmatprep.subr.mxu0 0.0
    %641 = vmatpush1.msra.mxu0 0.0
    %642 = vmatprep.subr.mxu0 0.0
    %643 = vmatpush1.msra.mxu0 0.0
    %644 = vmatprep.subr.mxu0 0.0
    %645 = vmatpush1.msra.mxu0 0.0
    %646 = vmatprep.subr.mxu0 0.0
    %647 = vmatpush1.msra.mxu0 0.0
    %648 = vmatprep.subr.mxu0 0.0
    %649 = vmatpush1.msra.mxu0 0.0
    %650 = vmatprep.subr.mxu0 0.0
    %651 = vmatpush1.msra.mxu0 0.0
    %652 = vmatprep.subr.mxu0 0.0
    %653 = vmatpush1.msra.mxu0 0.0
    %654 = vmatprep.subr.mxu0 0.0
    %655 = vmatpush1.msra.mxu0 0.0
    %656 = vmatprep.subr.mxu0 0.0
    %657 = vmatpush1.msra.mxu0 0.0
    %658 = vmatprep.subr.mxu0 0.0
    %659 = vmatpush1.msra.mxu0 0.0
    %660 = vmatprep.subr.mxu0 0.0
    %661 = vmatpush1.msra.mxu0 0.0
    %662 = vmatprep.mubr.f32.mxu0 0.0
    %663 = vmatmul.mubr.f32.gmra.mrb[0].mxu0 %v596
    %v664 = vpop.f32.mrb[0].mxu0
    %v665 = vadd.f32 0.0, %v664
    %v666 = vpop.f32.mrb[0].mxu0
    %667 = vdwg.mxu0
    %v668 = vadd.f32 %v335, %v665
    %v669 = vxor.u32 %v668, 2147483648
    %v670 = vmul.f32 %v669, 1.442695
    %v671 = vpow.pop %v670
    %v672 = vadd.f32 %v671, 1.0
    %v673 = vrcp.pop %v672
    %v674 = vmul.f32 1.0, %v673
    %v675 = vtanh.pop %v668
    %v676 = vmul.f32 %v674, %v592
    %678 = vrot.lane.b32.xlu0 %v675, 32
    %v679 = vpop.permute.xlu0 %678
    %v681 = vmul.f32 %v674, %v679
    %683 = vrot.lane.b32.xlu0 %v681, 32
    %v684 = vpop.permute.xlu0 %683
    %v686 = vadd.f32 %v676, %v684
    %v687 = vtanh.pop %v686
    %689 = vrot.lane.b32.xlu0 %v687, 32
    %v690 = vpop.permute.xlu0 %689
    %v692 = vmul.f32 %v674, %v690
    %694 = vrot.lane.b32.xlu0 %v692, 64
    %v695 = vpop.permute.xlu0 %694
    %697 = vst.msk [vmem:[#allocation2 + $0x10] sm:$0xff] %vm368, %v695
    %vm698 = vcmp.gt.s32.totalorder %v367, 2
    %v699 = vsel %vm698, 1, 0
    %700 = vset.pattern.permute.xlu0 0
    %701 = vperm.xlu0 %700, %v699
    %v702 = vpop.permute.xlu0 %701
    %vm703 = vcmp.eq.s32.totalorder %v702, 1
    %v704 = vsel %vm703, %v692, %v591
    %v705 = vsel %vm703, %v686, %v592
    %707 = vrot.lane.b32.xlu0 %v704, 64
    %v708 = vpop.permute.xlu0 %707
    %v709 = vsel %vm368, %v708, 0
    %711 = vmatprep.subr.mxu0 0.0
    %712 = vmatpush1.msra.mxu0 %v363
    %713 = vmatprep.subr.mxu0 0.0
    %714 = vmatpush1.msra.mxu0 %v364
    %715 = vmatprep.subr.mxu0 0.0
    %716 = vmatpush1.msra.mxu0 %v365
    %717 = vmatprep.subr.mxu0 0.0
    %718 = vmatpush1.msra.mxu0 %v366
    %719 = vmatprep.subr.mxu0 0.0
    %720 = vmatpush1.msra.mxu0 0.0
    %721 = vmatprep.subr.mxu0 0.0
    %722 = vmatpush1.msra.mxu0 0.0
    %723 = vmatprep.subr.mxu0 0.0
    %724 = vmatpush1.msra.mxu0 0.0
    %725 = vmatprep.subr.mxu0 0.0
    %726 = vmatpush1.msra.mxu0 0.0
    %727 = vmatprep.subr.mxu0 0.0
    %728 = vmatpush1.msra.mxu0 0.0
    %729 = vmatprep.subr.mxu0 0.0
    %730 = vmatpush1.msra.mxu0 0.0
    %731 = vmatprep.subr.mxu0 0.0
    %732 = vmatpush1.msra.mxu0 0.0
    %733 = vmatprep.subr.mxu0 0.0
    %734 = vmatpush1.msra.mxu0 0.0
    %735 = vmatprep.subr.mxu0 0.0
    %736 = vmatpush1.msra.mxu0 0.0
    %737 = vmatprep.subr.mxu0 0.0
    %738 = vmatpush1.msra.mxu0 0.0
    %739 = vmatprep.subr.mxu0 0.0
    %740 = vmatpush1.msra.mxu0 0.0
    %741 = vmatprep.subr.mxu0 0.0
    %742 = vmatpush1.msra.mxu0 0.0
    %743 = vmatprep.subr.mxu0 0.0
    %744 = vmatpush1.msra.mxu0 0.0
    %745 = vmatprep.subr.mxu0 0.0
    %746 = vmatpush1.msra.mxu0 0.0
    %747 = vmatprep.subr.mxu0 0.0
    %748 = vmatpush1.msra.mxu0 0.0
    %749 = vmatprep.subr.mxu0 0.0
    %750 = vmatpush1.msra.mxu0 0.0
    %751 = vmatprep.subr.mxu0 0.0
    %752 = vmatpush1.msra.mxu0 0.0
    %753 = vmatprep.subr.mxu0 0.0
    %754 = vmatpush1.msra.mxu0 0.0
    %755 = vmatprep.subr.mxu0 0.0
    %756 = vmatpush1.msra.mxu0 0.0
    %757 = vmatprep.subr.mxu0 0.0
    %758 = vmatpush1.msra.mxu0 0.0
    %759 = vmatprep.subr.mxu0 0.0
    %760 = vmatpush1.msra.mxu0 0.0
    %761 = vmatprep.subr.mxu0 0.0
    %762 = vmatpush1.msra.mxu0 0.0
    %763 = vmatprep.subr.mxu0 0.0
    %764 = vmatpush1.msra.mxu0 0.0
    %765 = vmatprep.subr.mxu0 0.0
    %766 = vmatpush1.msra.mxu0 0.0
    %767 = vmatprep.subr.mxu0 0.0
    %768 = vmatpush1.msra.mxu0 0.0
    %769 = vmatprep.subr.mxu0 0.0
    %770 = vmatpush1.msra.mxu0 0.0
    %771 = vmatprep.subr.mxu0 0.0
    %772 = vmatpush1.msra.mxu0 0.0
    %773 = vmatprep.subr.mxu0 0.0
    %774 = vmatpush1.msra.mxu0 0.0
    %775 = vmatprep.mubr.f32.mxu0 0.0
    %776 = vmatmul.mubr.f32.gmra.mrb[0].mxu0 %v709
    %v777 = vpop.f32.mrb[0].mxu0
    %v778 = vadd.f32 0.0, %v777
    %v779 = vpop.f32.mrb[0].mxu0
    %780 = vdwg.mxu0
    %v781 = vadd.f32 %v340, %v778
    %v782 = vxor.u32 %v781, 2147483648
    %v783 = vmul.f32 %v782, 1.442695
    %v784 = vpow.pop %v783
    %v785 = vadd.f32 %v784, 1.0
    %v786 = vrcp.pop %v785
    %v787 = vmul.f32 1.0, %v786
    %v788 = vtanh.pop %v781
    %v789 = vmul.f32 %v787, %v705
    %791 = vrot.lane.b32.xlu0 %v788, 32
    %v792 = vpop.permute.xlu0 %791
    %v794 = vmul.f32 %v787, %v792
    %796 = vrot.lane.b32.xlu0 %v794, 32
    %v797 = vpop.permute.xlu0 %796
    %v799 = vadd.f32 %v789, %v797
    %v800 = vtanh.pop %v799
    %802 = vrot.lane.b32.xlu0 %v800, 32
    %v803 = vpop.permute.xlu0 %802
    %v805 = vmul.f32 %v787, %v803
    %807 = vrot.lane.b32.xlu0 %v805, 64
    %v808 = vpop.permute.xlu0 %807
    %810 = vst.msk [vmem:[#allocation2 + $0x18] sm:$0xff] %vm368, %v808
    %vm811 = vcmp.gt.s32.totalorder %v367, 3
    %v812 = vsel %vm811, 1, 0
    %813 = vset.pattern.permute.xlu0 0
    %814 = vperm.xlu0 %813, %v812
    %v815 = vpop.permute.xlu0 %814
    %vm816 = vcmp.eq.s32.totalorder %v815, 1
    %v817 = vsel %vm816, %v805, %v704
    %v818 = vsel %vm816, %v799, %v705
    %820 = vrot.lane.b32.xlu0 %v817, 64
    %v821 = vpop.permute.xlu0 %820
    %v822 = vsel %vm368, %v821, 0
    %824 = vmatprep.subr.mxu0 0.0
    %825 = vmatpush1.msra.mxu0 %v363
    %826 = vmatprep.subr.mxu0 0.0
    %827 = vmatpush1.msra.mxu0 %v364
    %828 = vmatprep.subr.mxu0 0.0
    %829 = vmatpush1.msra.mxu0 %v365
    %830 = vmatprep.subr.mxu0 0.0
    %831 = vmatpush1.msra.mxu0 %v366
    %832 = vmatprep.subr.mxu0 0.0
    %833 = vmatpush1.msra.mxu0 0.0
    %834 = vmatprep.subr.mxu0 0.0
    %835 = vmatpush1.msra.mxu0 0.0
    %836 = vmatprep.subr.mxu0 0.0
    %837 = vmatpush1.msra.mxu0 0.0
    %838 = vmatprep.subr.mxu0 0.0
    %839 = vmatpush1.msra.mxu0 0.0
    %840 = vmatprep.subr.mxu0 0.0
    %841 = vmatpush1.msra.mxu0 0.0
    %842 = vmatprep.subr.mxu0 0.0
    %843 = vmatpush1.msra.mxu0 0.0
    %844 = vmatprep.subr.mxu0 0.0
    %845 = vmatpush1.msra.mxu0 0.0
    %846 = vmatprep.subr.mxu0 0.0
    %847 = vmatpush1.msra.mxu0 0.0
    %848 = vmatprep.subr.mxu0 0.0
    %849 = vmatpush1.msra.mxu0 0.0
    %850 = vmatprep.subr.mxu0 0.0
    %851 = vmatpush1.msra.mxu0 0.0
    %852 = vmatprep.subr.mxu0 0.0
    %853 = vmatpush1.msra.mxu0 0.0
    %854 = vmatprep.subr.mxu0 0.0
    %855 = vmatpush1.msra.mxu0 0.0
    %856 = vmatprep.subr.mxu0 0.0
    %857 = vmatpush1.msra.mxu0 0.0
    %858 = vmatprep.subr.mxu0 0.0
    %859 = vmatpush1.msra.mxu0 0.0
    %860 = vmatprep.subr.mxu0 0.0
    %861 = vmatpush1.msra.mxu0 0.0
    %862 = vmatprep.subr.mxu0 0.0
    %863 = vmatpush1.msra.mxu0 0.0
    %864 = vmatprep.subr.mxu0 0.0
    %865 = vmatpush1.msra.mxu0 0.0
    %866 = vmatprep.subr.mxu0 0.0
    %867 = vmatpush1.msra.mxu0 0.0
    %868 = vmatprep.subr.mxu0 0.0
    %869 = vmatpush1.msra.mxu0 0.0
    %870 = vmatprep.subr.mxu0 0.0
    %871 = vmatpush1.msra.mxu0 0.0
    %872 = vmatprep.subr.mxu0 0.0
    %873 = vmatpush1.msra.mxu0 0.0
    %874 = vmatprep.subr.mxu0 0.0
    %875 = vmatpush1.msra.mxu0 0.0
    %876 = vmatprep.subr.mxu0 0.0
    %877 = vmatpush1.msra.mxu0 0.0
    %878 = vmatprep.subr.mxu0 0.0
    %879 = vmatpush1.msra.mxu0 0.0
    %880 = vmatprep.subr.mxu0 0.0
    %881 = vmatpush1.msra.mxu0 0.0
    %882 = vmatprep.subr.mxu0 0.0
    %883 = vmatpush1.msra.mxu0 0.0
    %884 = vmatprep.subr.mxu0 0.0
    %885 = vmatpush1.msra.mxu0 0.0
    %886 = vmatprep.subr.mxu0 0.0
    %887 = vmatpush1.msra.mxu0 0.0
    %888 = vmatprep.mubr.f32.mxu0 0.0
    %889 = vmatmul.mubr.f32.gmra.mrb[0].mxu0 %v822
    %v890 = vpop.f32.mrb[0].mxu0
    %v891 = vadd.f32 0.0, %v890
    %v892 = vpop.f32.mrb[0].mxu0
    %893 = vdwg.mxu0
    %v894 = vadd.f32 %v345, %v891
    %v895 = vxor.u32 %v894, 2147483648
    %v896 = vmul.f32 %v895, 1.442695
    %v897 = vpow.pop %v896
    %v898 = vadd.f32 %v897, 1.0
    %v899 = vrcp.pop %v898
    %v900 = vmul.f32 1.0, %v899
    %v901 = vtanh.pop %v894
    %v902 = vmul.f32 %v900, %v818
    %904 = vrot.lane.b32.xlu0 %v901, 32
    %v905 = vpop.permute.xlu0 %904
    %v907 = vmul.f32 %v900, %v905
    %909 = vrot.lane.b32.xlu0 %v907, 32
    %v910 = vpop.permute.xlu0 %909
    %v912 = vadd.f32 %v902, %v910
    %v913 = vtanh.pop %v912
    %915 = vrot.lane.b32.xlu0 %v913, 32
    %v916 = vpop.permute.xlu0 %915
    %v918 = vmul.f32 %v900, %v916
    %920 = vrot.lane.b32.xlu0 %v918, 64
    %v921 = vpop.permute.xlu0 %920
    %923 = vst.msk [vmem:[#allocation2 + $0x20] sm:$0xff] %vm368, %v921
    %vm924 = vcmp.gt.s32.totalorder %v367, 4
    %v925 = vsel %vm924, 1, 0
    %926 = vset.pattern.permute.xlu0 0
    %927 = vperm.xlu0 %926, %v925
    %v928 = vpop.permute.xlu0 %927
    %vm929 = vcmp.eq.s32.totalorder %v928, 1
    %v930 = vsel %vm929, %v918, %v817
    %v931 = vsel %vm929, %v912, %v818
    %933 = vrot.lane.b32.xlu0 %v930, 64
    %v934 = vpop.permute.xlu0 %933
    %v935 = vsel %vm368, %v934, 0
    %937 = vmatprep.subr.mxu0 0.0
    %938 = vmatpush1.msra.mxu0 %v363
    %939 = vmatprep.subr.mxu0 0.0
    %940 = vmatpush1.msra.mxu0 %v364
    %941 = vmatprep.subr.mxu0 0.0
    %942 = vmatpush1.msra.mxu0 %v365
    %943 = vmatprep.subr.mxu0 0.0
    %944 = vmatpush1.msra.mxu0 %v366
    %945 = vmatprep.subr.mxu0 0.0
    %946 = vmatpush1.msra.mxu0 0.0
    %947 = vmatprep.subr.mxu0 0.0
    %948 = vmatpush1.msra.mxu0 0.0
    %949 = vmatprep.subr.mxu0 0.0
    %950 = vmatpush1.msra.mxu0 0.0
    %951 = vmatprep.subr.mxu0 0.0
    %952 = vmatpush1.msra.mxu0 0.0
    %953 = vmatprep.subr.mxu0 0.0
    %954 = vmatpush1.msra.mxu0 0.0
    %955 = vmatprep.subr.mxu0 0.0
    %956 = vmatpush1.msra.mxu0 0.0
    %957 = vmatprep.subr.mxu0 0.0
    %958 = vmatpush1.msra.mxu0 0.0
    %959 = vmatprep.subr.mxu0 0.0
    %960 = vmatpush1.msra.mxu0 0.0
    %961 = vmatprep.subr.mxu0 0.0
    %962 = vmatpush1.msra.mxu0 0.0
    %963 = vmatprep.subr.mxu0 0.0
    %964 = vmatpush1.msra.mxu0 0.0
    %965 = vmatprep.subr.mxu0 0.0
    %966 = vmatpush1.msra.mxu0 0.0
    %967 = vmatprep.subr.mxu0 0.0
    %968 = vmatpush1.msra.mxu0 0.0
    %969 = vmatprep.subr.mxu0 0.0
    %970 = vmatpush1.msra.mxu0 0.0
    %971 = vmatprep.subr.mxu0 0.0
    %972 = vmatpush1.msra.mxu0 0.0
    %973 = vmatprep.subr.mxu0 0.0
    %974 = vmatpush1.msra.mxu0 0.0
    %975 = vmatprep.subr.mxu0 0.0
    %976 = vmatpush1.msra.mxu0 0.0
    %977 = vmatprep.subr.mxu0 0.0
    %978 = vmatpush1.msra.mxu0 0.0
    %979 = vmatprep.subr.mxu0 0.0
    %980 = vmatpush1.msra.mxu0 0.0
    %981 = vmatprep.subr.mxu0 0.0
    %982 = vmatpush1.msra.mxu0 0.0
    %983 = vmatprep.subr.mxu0 0.0
    %984 = vmatpush1.msra.mxu0 0.0
    %985 = vmatprep.subr.mxu0 0.0
    %986 = vmatpush1.msra.mxu0 0.0
    %987 = vmatprep.subr.mxu0 0.0
    %988 = vmatpush1.msra.mxu0 0.0
    %989 = vmatprep.subr.mxu0 0.0
    %990 = vmatpush1.msra.mxu0 0.0
    %991 = vmatprep.subr.mxu0 0.0
    %992 = vmatpush1.msra.mxu0 0.0
    %993 = vmatprep.subr.mxu0 0.0
    %994 = vmatpush1.msra.mxu0 0.0
    %995 = vmatprep.subr.mxu0 0.0
    %996 = vmatpush1.msra.mxu0 0.0
    %997 = vmatprep.subr.mxu0 0.0
    %998 = vmatpush1.msra.mxu0 0.0
    %999 = vmatprep.subr.mxu0 0.0
    %1000 = vmatpush1.msra.mxu0 0.0
    %1001 = vmatprep.mubr.f32.mxu0 0.0
    %1002 = vmatmul.mubr.f32.gmra.mrb[0].mxu0 %v935
    %v1003 = vpop.f32.mrb[0].mxu0
    %v1004 = vadd.f32 0.0, %v1003
    %v1005 = vpop.f32.mrb[0].mxu0
    %1006 = vdwg.mxu0
    %v1007 = vadd.f32 %v350, %v1004
    %v1008 = vxor.u32 %v1007, 2147483648
    %v1009 = vmul.f32 %v1008, 1.442695
    %v1010 = vpow.pop %v1009
    %v1011 = vadd.f32 %v1010, 1.0
    %v1012 = vrcp.pop %v1011
    %v1013 = vmul.f32 1.0, %v1012
    %v1014 = vtanh.pop %v1007
    %v1015 = vmul.f32 %v1013, %v931
    %1017 = vrot.lane.b32.xlu0 %v1014, 32
    %v1018 = vpop.permute.xlu0 %1017
    %v1020 = vmul.f32 %v1013, %v1018
    %1022 = vrot.lane.b32.xlu0 %v1020, 32
    %v1023 = vpop.permute.xlu0 %1022
    %v1025 = vadd.f32 %v1015, %v1023
    %v1026 = vtanh.pop %v1025
    %1028 = vrot.lane.b32.xlu0 %v1026, 32
    %v1029 = vpop.permute.xlu0 %1028
    %v1031 = vmul.f32 %v1013, %v1029
    %1033 = vrot.lane.b32.xlu0 %v1031, 64
    %v1034 = vpop.permute.xlu0 %1033
    %1036 = vst.msk [vmem:[#allocation2 + $0x28] sm:$0xff] %vm368, %v1034
    %vm1037 = vcmp.gt.s32.totalorder %v367, 5
    %v1038 = vsel %vm1037, 1, 0
    %1039 = vset.pattern.permute.xlu0 0
    %1040 = vperm.xlu0 %1039, %v1038
    %v1041 = vpop.permute.xlu0 %1040
    %vm1042 = vcmp.eq.s32.totalorder %v1041, 1
    %v1043 = vsel %vm1042, %v1031, %v930
    %v1044 = vsel %vm1042, %v1025, %v931
    %1046 = vrot.lane.b32.xlu0 %v1043, 64
    %v1047 = vpop.permute.xlu0 %1046
    %v1048 = vsel %vm368, %v1047, 0
    %1050 = vmatprep.subr.mxu0 0.0
    %1051 = vmatpush1.msra.mxu0 %v363
    %1052 = vmatprep.subr.mxu0 0.0
    %1053 = vmatpush1.msra.mxu0 %v364
    %1054 = vmatprep.subr.mxu0 0.0
    %1055 = vmatpush1.msra.mxu0 %v365
    %1056 = vmatprep.subr.mxu0 0.0
    %1057 = vmatpush1.msra.mxu0 %v366
    %1058 = vmatprep.subr.mxu0 0.0
    %1059 = vmatpush1.msra.mxu0 0.0
    %1060 = vmatprep.subr.mxu0 0.0
    %1061 = vmatpush1.msra.mxu0 0.0
    %1062 = vmatprep.subr.mxu0 0.0
    %1063 = vmatpush1.msra.mxu0 0.0
    %1064 = vmatprep.subr.mxu0 0.0
    %1065 = vmatpush1.msra.mxu0 0.0
    %1066 = vmatprep.subr.mxu0 0.0
    %1067 = vmatpush1.msra.mxu0 0.0
    %1068 = vmatprep.subr.mxu0 0.0
    %1069 = vmatpush1.msra.mxu0 0.0
    %1070 = vmatprep.subr.mxu0 0.0
    %1071 = vmatpush1.msra.mxu0 0.0
    %1072 = vmatprep.subr.mxu0 0.0
    %1073 = vmatpush1.msra.mxu0 0.0
    %1074 = vmatprep.subr.mxu0 0.0
    %1075 = vmatpush1.msra.mxu0 0.0
    %1076 = vmatprep.subr.mxu0 0.0
    %1077 = vmatpush1.msra.mxu0 0.0
    %1078 = vmatprep.subr.mxu0 0.0
    %1079 = vmatpush1.msra.mxu0 0.0
    %1080 = vmatprep.subr.mxu0 0.0
    %1081 = vmatpush1.msra.mxu0 0.0
    %1082 = vmatprep.subr.mxu0 0.0
    %1083 = vmatpush1.msra.mxu0 0.0
    %1084 = vmatprep.subr.mxu0 0.0
    %1085 = vmatpush1.msra.mxu0 0.0
    %1086 = vmatprep.subr.mxu0 0.0
    %1087 = vmatpush1.msra.mxu0 0.0
    %1088 = vmatprep.subr.mxu0 0.0
    %1089 = vmatpush1.msra.mxu0 0.0
    %1090 = vmatprep.subr.mxu0 0.0
    %1091 = vmatpush1.msra.mxu0 0.0
    %1092 = vmatprep.subr.mxu0 0.0
    %1093 = vmatpush1.msra.mxu0 0.0
    %1094 = vmatprep.subr.mxu0 0.0
    %1095 = vmatpush1.msra.mxu0 0.0
    %1096 = vmatprep.subr.mxu0 0.0
    %1097 = vmatpush1.msra.mxu0 0.0
    %1098 = vmatprep.subr.mxu0 0.0
    %1099 = vmatpush1.msra.mxu0 0.0
    %1100 = vmatprep.subr.mxu0 0.0
    %1101 = vmatpush1.msra.mxu0 0.0
    %1102 = vmatprep.subr.mxu0 0.0
    %1103 = vmatpush1.msra.mxu0 0.0
    %1104 = vmatprep.subr.mxu0 0.0
    %1105 = vmatpush1.msra.mxu0 0.0
    %1106 = vmatprep.subr.mxu0 0.0
    %1107 = vmatpush1.msra.mxu0 0.0
    %1108 = vmatprep.subr.mxu0 0.0
    %1109 = vmatpush1.msra.mxu0 0.0
    %1110 = vmatprep.subr.mxu0 0.0
    %1111 = vmatpush1.msra.mxu0 0.0
    %1112 = vmatprep.subr.mxu0 0.0
    %1113 = vmatpush1.msra.mxu0 0.0
    %1114 = vmatprep.mubr.f32.mxu0 0.0
    %1115 = vmatmul.mubr.f32.gmra.mrb[0].mxu0 %v1048
    %v1116 = vpop.f32.mrb[0].mxu0
    %v1117 = vadd.f32 0.0, %v1116
    %v1118 = vpop.f32.mrb[0].mxu0
    %1119 = vdwg.mxu0
    %v1120 = vadd.f32 %v355, %v1117
    %v1121 = vxor.u32 %v1120, 2147483648
    %v1122 = vmul.f32 %v1121, 1.442695
    %v1123 = vpow.pop %v1122
    %v1124 = vadd.f32 %v1123, 1.0
    %v1125 = vrcp.pop %v1124
    %v1126 = vmul.f32 1.0, %v1125
    %v1127 = vtanh.pop %v1120
    %v1128 = vmul.f32 %v1126, %v1044
    %1130 = vrot.lane.b32.xlu0 %v1127, 32
    %v1131 = vpop.permute.xlu0 %1130
    %v1133 = vmul.f32 %v1126, %v1131
    %1135 = vrot.lane.b32.xlu0 %v1133, 32
    %v1136 = vpop.permute.xlu0 %1135
    %v1138 = vadd.f32 %v1128, %v1136
    %v1139 = vtanh.pop %v1138
    %1141 = vrot.lane.b32.xlu0 %v1139, 32
    %v1142 = vpop.permute.xlu0 %1141
    %v1144 = vmul.f32 %v1126, %v1142
    %1146 = vrot.lane.b32.xlu0 %v1144, 64
    %v1147 = vpop.permute.xlu0 %1146
    %1149 = vst.msk [vmem:[#allocation2 + $0x30] sm:$0xff] %vm368, %v1147
    %vm1150 = vcmp.gt.s32.totalorder %v367, 6
    %v1151 = vsel %vm1150, 1, 0
    %1152 = vset.pattern.permute.xlu0 0
    %1153 = vperm.xlu0 %1152, %v1151
    %v1154 = vpop.permute.xlu0 %1153
    %vm1155 = vcmp.eq.s32.totalorder %v1154, 1
    %v1156 = vsel %vm1155, %v1144, %v1043
    %v1157 = vsel %vm1155, %v1138, %v1044
    %1159 = vrot.lane.b32.xlu0 %v1156, 64
    %v1160 = vpop.permute.xlu0 %1159
    %v1161 = vsel %vm368, %v1160, 0
    %1163 = vmatprep.subr.mxu0 0.0
    %1164 = vmatpush1.msra.mxu0 %v363
    %1165 = vmatprep.subr.mxu0 0.0
    %1166 = vmatpush1.msra.mxu0 %v364
    %1167 = vmatprep.subr.mxu0 0.0
    %1168 = vmatpush1.msra.mxu0 %v365
    %1169 = vmatprep.subr.mxu0 0.0
    %1170 = vmatpush1.msra.mxu0 %v366
    %1171 = vmatprep.subr.mxu0 0.0
    %1172 = vmatpush1.msra.mxu0 0.0
    %1173 = vmatprep.subr.mxu0 0.0
    %1174 = vmatpush1.msra.mxu0 0.0
    %1175 = vmatprep.subr.mxu0 0.0
    %1176 = vmatpush1.msra.mxu0 0.0
    %1177 = vmatprep.subr.mxu0 0.0
    %1178 = vmatpush1.msra.mxu0 0.0
    %1179 = vmatprep.subr.mxu0 0.0
    %1180 = vmatpush1.msra.mxu0 0.0
    %1181 = vmatprep.subr.mxu0 0.0
    %1182 = vmatpush1.msra.mxu0 0.0
    %1183 = vmatprep.subr.mxu0 0.0
    %1184 = vmatpush1.msra.mxu0 0.0
    %1185 = vmatprep.subr.mxu0 0.0
    %1186 = vmatpush1.msra.mxu0 0.0
    %1187 = vmatprep.subr.mxu0 0.0
    %1188 = vmatpush1.msra.mxu0 0.0
    %1189 = vmatprep.subr.mxu0 0.0
    %1190 = vmatpush1.msra.mxu0 0.0
    %1191 = vmatprep.subr.mxu0 0.0
    %1192 = vmatpush1.msra.mxu0 0.0
    %1193 = vmatprep.subr.mxu0 0.0
    %1194 = vmatpush1.msra.mxu0 0.0
    %1195 = vmatprep.subr.mxu0 0.0
    %1196 = vmatpush1.msra.mxu0 0.0
    %1197 = vmatprep.subr.mxu0 0.0
    %1198 = vmatpush1.msra.mxu0 0.0
    %1199 = vmatprep.subr.mxu0 0.0
    %1200 = vmatpush1.msra.mxu0 0.0
    %1201 = vmatprep.subr.mxu0 0.0
    %1202 = vmatpush1.msra.mxu0 0.0
    %1203 = vmatprep.subr.mxu0 0.0
    %1204 = vmatpush1.msra.mxu0 0.0
    %1205 = vmatprep.subr.mxu0 0.0
    %1206 = vmatpush1.msra.mxu0 0.0
    %1207 = vmatprep.subr.mxu0 0.0
    %1208 = vmatpush1.msra.mxu0 0.0
    %1209 = vmatprep.subr.mxu0 0.0
    %1210 = vmatpush1.msra.mxu0 0.0
    %1211 = vmatprep.subr.mxu0 0.0
    %1212 = vmatpush1.msra.mxu0 0.0
    %1213 = vmatprep.subr.mxu0 0.0
    %1214 = vmatpush1.msra.mxu0 0.0
    %1215 = vmatprep.subr.mxu0 0.0
    %1216 = vmatpush1.msra.mxu0 0.0
    %1217 = vmatprep.subr.mxu0 0.0
    %1218 = vmatpush1.msra.mxu0 0.0
    %1219 = vmatprep.subr.mxu0 0.0
    %1220 = vmatpush1.msra.mxu0 0.0
    %1221 = vmatprep.subr.mxu0 0.0
    %1222 = vmatpush1.msra.mxu0 0.0
    %1223 = vmatprep.subr.mxu0 0.0
    %1224 = vmatpush1.msra.mxu0 0.0
    %1225 = vmatprep.subr.mxu0 0.0
    %1226 = vmatpush1.msra.mxu0 0.0
    %1227 = vmatprep.mubr.f32.mxu0 0.0
    %1228 = vmatmul.mubr.f32.gmra.mrb[0].mxu0 %v1161
    %v1229 = vpop.f32.mrb[0].mxu0
    %v1230 = vadd.f32 0.0, %v1229
    %v1231 = vpop.f32.mrb[0].mxu0
    %1232 = vdwg.mxu0
    %v1233 = vadd.f32 %v360, %v1230
    %v1234 = vxor.u32 %v1233, 2147483648
    %v1235 = vmul.f32 %v1234, 1.442695
    %v1236 = vpow.pop %v1235
    %v1237 = vadd.f32 %v1236, 1.0
    %v1238 = vrcp.pop %v1237
    %v1239 = vmul.f32 1.0, %v1238
    %v1240 = vtanh.pop %v1233
    %v1241 = vmul.f32 %v1239, %v1157
    %1243 = vrot.lane.b32.xlu0 %v1240, 32
    %v1244 = vpop.permute.xlu0 %1243
    %v1246 = vmul.f32 %v1239, %v1244
    %1248 = vrot.lane.b32.xlu0 %v1246, 32
    %v1249 = vpop.permute.xlu0 %1248
    %v1251 = vadd.f32 %v1241, %v1249
    %v1252 = vtanh.pop %v1251
    %1254 = vrot.lane.b32.xlu0 %v1252, 32
    %v1255 = vpop.permute.xlu0 %1254
    %v1257 = vmul.f32 %v1239, %v1255
    %1259 = vrot.lane.b32.xlu0 %v1257, 64
    %v1260 = vpop.permute.xlu0 %1259
    %1262 = vst.msk [vmem:[#allocation2 + $0x38] sm:$0xff] %vm368, %v1260
    %v1263 = vld [vmem:[#allocation2] sm:$0xff]
    %v1264 = vld [vmem:[#allocation2 + $0x8] sm:$0xff]
    %v1265 = vld [vmem:[#allocation2 + $0x10] sm:$0xff]
    %v1266 = vld [vmem:[#allocation2 + $0x18] sm:$0xff]
    %v1267 = vld [vmem:[#allocation2 + $0x20] sm:$0xff]
    %v1268 = vld [vmem:[#allocation2 + $0x28] sm:$0xff]
    %v1269 = vld [vmem:[#allocation2 + $0x30] sm:$0xff]
    %v1270 = vld [vmem:[#allocation2 + $0x38] sm:$0xff]
    %v1271 = vld [vmem:[%s2] sm:$0xff]
    %v1272 = vld [vmem:[%s2 + $0x8] sm:$0xff]
    %v1273 = vld [vmem:[%s2 + $0x10] sm:$0xff]
    %v1274 = vld [vmem:[%s2 + $0x18] sm:$0xff]
    %v1275 = vld [vmem:[%s2 + $0x20] sm:$0xff]
    %v1276 = vld [vmem:[%s2 + $0x28] sm:$0xff]
    %v1277 = vld [vmem:[%s2 + $0x30] sm:$0xff]
    %v1278 = vld [vmem:[%s2 + $0x38] sm:$0xff]
    %1280 = vset.pattern.permute.xlu0 0
    %1281 = vperm.xlu0 %1280, %v1271
    %v1282 = vpop.permute.xlu0 %1281
    %1285 = vset.pattern.permute.xlu0 0
    %1286 = vperm.xlu0 %1285, %v1272
    %v1287 = vpop.permute.xlu0 %1286
    %1290 = vset.pattern.permute.xlu0 0
    %1291 = vperm.xlu0 %1290, %v1273
    %v1292 = vpop.permute.xlu0 %1291
    %1295 = vset.pattern.permute.xlu0 0
    %1296 = vperm.xlu0 %1295, %v1274
    %v1297 = vpop.permute.xlu0 %1296
    %1300 = vset.pattern.permute.xlu0 0
    %1301 = vperm.xlu0 %1300, %v1275
    %v1302 = vpop.permute.xlu0 %1301
    %1305 = vset.pattern.permute.xlu0 0
    %1306 = vperm.xlu0 %1305, %v1276
    %v1307 = vpop.permute.xlu0 %1306
    %1310 = vset.pattern.permute.xlu0 0
    %1311 = vperm.xlu0 %1310, %v1277
    %v1312 = vpop.permute.xlu0 %1311
    %1315 = vset.pattern.permute.xlu0 0
    %1316 = vperm.xlu0 %1315, %v1278
    %v1317 = vpop.permute.xlu0 %1316
    %v1319 = vmul.f32 %v1263, %v1282
    %v1320 = vmul.f32 %v1264, %v1287
    %v1321 = vmul.f32 %v1265, %v1292
    %v1322 = vmul.f32 %v1266, %v1297
    %v1323 = vmul.f32 %v1267, %v1302
    %v1324 = vmul.f32 %v1268, %v1307
    %v1325 = vmul.f32 %v1269, %v1312
    %v1326 = vmul.f32 %v1270, %v1317
    %v1327 = vld [vmem:[%s7] sm:$0xff]
    %v1328 = vld [vmem:[%s7 + $0x8] sm:$0xff]
    %v1329 = vld [vmem:[%s7 + $0x10] sm:$0xff]
    %v1330 = vld [vmem:[%s7 + $0x18] sm:$0xff]
    %v1331 = vld [vmem:[%s8] sm:$0x1]
    %v1333 = vlaneseq
    %v1334 = vshrl.u32 %v1333, 7
    %v1335 = vsub.s32 0, %v1334
    %v1336 = vrot.slane %v1331, %v1335
    %v1339 = vsel %vm368, %v1319, 0
    %v1342 = vsel %vm368, %v1320, 0
    %v1345 = vsel %vm368, %v1321, 0
    %v1348 = vsel %vm368, %v1322, 0
    %v1351 = vsel %vm368, %v1323, 0
    %v1354 = vsel %vm368, %v1324, 0
    %v1357 = vsel %vm368, %v1325, 0
    %v1360 = vsel %vm368, %v1326, 0
    %1362 = vmatprep.subr.mxu0 0.0
    %1363 = vmatpush1.msra.mxu0 %v1327
    %1364 = vmatprep.subr.mxu0 0.0
    %1365 = vmatpush1.msra.mxu0 %v1328
    %1366 = vmatprep.subr.mxu0 0.0
    %1367 = vmatpush1.msra.mxu0 %v1329
    %1368 = vmatprep.subr.mxu0 0.0
    %1369 = vmatpush1.msra.mxu0 %v1330
    %1370 = vmatprep.subr.mxu0 0.0
    %1371 = vmatpush1.msra.mxu0 0.0
    %1372 = vmatprep.subr.mxu0 0.0
    %1373 = vmatpush1.msra.mxu0 0.0
    %1374 = vmatprep.subr.mxu0 0.0
    %1375 = vmatpush1.msra.mxu0 0.0
    %1376 = vmatprep.subr.mxu0 0.0
    %1377 = vmatpush1.msra.mxu0 0.0
    %1378 = vmatprep.subr.mxu0 0.0
    %1379 = vmatpush1.msra.mxu0 0.0
    %1380 = vmatprep.subr.mxu0 0.0
    %1381 = vmatpush1.msra.mxu0 0.0
    %1382 = vmatprep.subr.mxu0 0.0
    %1383 = vmatpush1.msra.mxu0 0.0
    %1384 = vmatprep.subr.mxu0 0.0
    %1385 = vmatpush1.msra.mxu0 0.0
    %1386 = vmatprep.subr.mxu0 0.0
    %1387 = vmatpush1.msra.mxu0 0.0
    %1388 = vmatprep.subr.mxu0 0.0
    %1389 = vmatpush1.msra.mxu0 0.0
    %1390 = vmatprep.subr.mxu0 0.0
    %1391 = vmatpush1.msra.mxu0 0.0
    %1392 = vmatprep.subr.mxu0 0.0
    %1393 = vmatpush1.msra.mxu0 0.0
    %1394 = vmatprep.subr.mxu0 0.0
    %1395 = vmatpush1.msra.mxu0 0.0
    %1396 = vmatprep.subr.mxu0 0.0
    %1397 = vmatpush1.msra.mxu0 0.0
    %1398 = vmatprep.subr.mxu0 0.0
    %1399 = vmatpush1.msra.mxu0 0.0
    %1400 = vmatprep.subr.mxu0 0.0
    %1401 = vmatpush1.msra.mxu0 0.0
    %1402 = vmatprep.subr.mxu0 0.0
    %1403 = vmatpush1.msra.mxu0 0.0
    %1404 = vmatprep.subr.mxu0 0.0
    %1405 = vmatpush1.msra.mxu0 0.0
    %1406 = vmatprep.subr.mxu0 0.0
    %1407 = vmatpush1.msra.mxu0 0.0
    %1408 = vmatprep.subr.mxu0 0.0
    %1409 = vmatpush1.msra.mxu0 0.0
    %1410 = vmatprep.subr.mxu0 0.0
    %1411 = vmatpush1.msra.mxu0 0.0
    %1412 = vmatprep.subr.mxu0 0.0
    %1413 = vmatpush1.msra.mxu0 0.0
    %1414 = vmatprep.subr.mxu0 0.0
    %1415 = vmatpush1.msra.mxu0 0.0
    %1416 = vmatprep.subr.mxu0 0.0
    %1417 = vmatpush1.msra.mxu0 0.0
    %1418 = vmatprep.subr.mxu0 0.0
    %1419 = vmatpush1.msra.mxu0 0.0
    %1420 = vmatprep.subr.mxu0 0.0
    %1421 = vmatpush1.msra.mxu0 0.0
    %1422 = vmatprep.subr.mxu0 0.0
    %1423 = vmatpush1.msra.mxu0 0.0
    %1424 = vmatprep.subr.mxu0 0.0
    %1425 = vmatpush1.msra.mxu0 0.0
    %1426 = vmatprep.mubr.f32.mxu0 0.0
    %1427 = vmatmul.mubr.f32.gmra.mrb[0].mxu0 %v1339
    %v1428 = vpop.f32.mrb[0].mxu0
    %v1429 = vadd.f32 %v1336, %v1428
    %v1430 = vpop.f32.mrb[0].mxu0
    %1431 = vmatprep.mubr.f32.mxu0 0.0
    %1432 = vmatmul.mubr.f32.gmra.mrb[0].mxu0 %v1342
    %v1433 = vpop.f32.mrb[0].mxu0
    %v1434 = vadd.f32 %v1336, %v1433
    %v1435 = vpop.f32.mrb[0].mxu0
    %1436 = vmatprep.mubr.f32.mxu0 0.0
    %1437 = vmatmul.mubr.f32.gmra.mrb[0].mxu0 %v1345
    %v1438 = vpop.f32.mrb[0].mxu0
    %v1439 = vadd.f32 %v1336, %v1438
    %v1440 = vpop.f32.mrb[0].mxu0
    %1441 = vmatprep.mubr.f32.mxu0 0.0
    %1442 = vmatmul.mubr.f32.gmra.mrb[0].mxu0 %v1348
    %v1443 = vpop.f32.mrb[0].mxu0
    %v1444 = vadd.f32 %v1336, %v1443
    %v1445 = vpop.f32.mrb[0].mxu0
    %1446 = vmatprep.mubr.f32.mxu0 0.0
    %1447 = vmatmul.mubr.f32.gmra.mrb[0].mxu0 %v1351
    %v1448 = vpop.f32.mrb[0].mxu0
    %v1449 = vadd.f32 %v1336, %v1448
    %v1450 = vpop.f32.mrb[0].mxu0
    %1451 = vmatprep.mubr.f32.mxu0 0.0
    %1452 = vmatmul.mubr.f32.gmra.mrb[0].mxu0 %v1354
    %v1453 = vpop.f32.mrb[0].mxu0
    %v1454 = vadd.f32 %v1336, %v1453
    %v1455 = vpop.f32.mrb[0].mxu0
    %1456 = vmatprep.mubr.f32.mxu0 0.0
    %1457 = vmatmul.mubr.f32.gmra.mrb[0].mxu0 %v1357
    %v1458 = vpop.f32.mrb[0].mxu0
    %v1459 = vadd.f32 %v1336, %v1458
    %v1460 = vpop.f32.mrb[0].mxu0
    %1461 = vmatprep.mubr.f32.mxu0 0.0
    %1462 = vmatmul.mubr.f32.gmra.mrb[0].mxu0 %v1360
    %v1463 = vpop.f32.mrb[0].mxu0
    %v1464 = vadd.f32 %v1336, %v1463
    %v1465 = vpop.f32.mrb[0].mxu0
    %1466 = vdwg.mxu0
    %1467 = vst [vmem:[#allocation3] sm:$0xff] %v1429
    %1468 = vst [vmem:[#allocation3 + $0x8] sm:$0xff] %v1434
    %1469 = vst [vmem:[#allocation3 + $0x10] sm:$0xff] %v1439
    %1470 = vst [vmem:[#allocation3 + $0x18] sm:$0xff] %v1444
    %1471 = vst [vmem:[#allocation3 + $0x20] sm:$0xff] %v1449
    %1472 = vst [vmem:[#allocation3 + $0x28] sm:$0xff] %v1454
    %1473 = vst [vmem:[#allocation3 + $0x30] sm:$0xff] %v1459
    %1474 = vst [vmem:[#allocation3 + $0x38] sm:$0xff] %v1464
    // Predicated region
    $region38: #{tpu_custom_call.1} parent=1 // pred_check
      _
    $region39: #{tpu_custom_call.1} parent=1 // pred_check_branch
      %1476 = sbr.rel (0) target = $region41
    $region40: #{tpu_custom_call.1} parent=1 // pred_region
      %s1478 = ssub.s32 1024, 1024
      %1479 = vsyncadd [#allocation4], %s1478
      %s1480 = sshll.u32 [#allocation3], 4
      %s1481 = int_to_ptr.vmem [resolvable:$true] %s1480
      %1486 = dma.vmem_to_hbm [thread:$0]  %s1481, 1024, %s9, [#allocation4], 128, 128, 8
    $region41: #{tpu_custom_call.1} parent=1 // pred_fallthru
      _
    // Predicated region
    $region42: #{tpu_custom_call.1} parent=1 // pred_check
      _
    $region43: #{tpu_custom_call.1} parent=1 // pred_check_branch
      %1488 = sbr.rel (0) target = $region45
    $region44: #{tpu_custom_call.1} parent=1 // pred_region
      %1489 = dma.done [#allocation4], 1024
    $region45: #{tpu_custom_call.1} parent=1 // pred_fallthru
      _
    %1490 = vsyncpa [#allocation4], 1

</llo_original>
